<compile_context>
chip_gen: v7x
topology: tpu7x:2x2x1
jax: 0.10.0
libtpu: 0.0.40
codegen_flags: <defaults>
</compile_context>

<pallas_src>
import jax
import jax.numpy as jnp
from jax.experimental import pallas as pl
from jax.experimental.pallas import tpu as pltpu

HIDDEN = 256       # hidden width of the SoftQNetwork MLP
OUT_PAD = 128      # lane-dense padded width of the final (256 -> 1) layer
MAX_TILE_B = 512   # batch-tile cap (amortizes per-grid-step overhead)


def _num_tensorcores_per_device():
    """Best-effort TensorCore count of the local device (grid sizing only)."""
    try:
        kind = jax.devices()[0].device_kind.lower()
    except Exception:
        return 1
    # Single-TC devices: v2/v3 (one device per core), v5e / v6e "lite" chips.
    if any(tag in kind for tag in ("lite", "v5e", "v6e", "v2", "v3")):
        return 1
    # v4 / v5p megacore and v7x expose 2 TensorCores per device.
    return 2


def _soft_q_kernel(xa_ref, w1_ref, w2_ref, w3_ref, w4_ref, b123_ref, b4_ref,
                   o_ref):
    """Fused 4-layer MLP for one batch tile.

    MXU matmuls in bf16 with f32 accumulation; bias-add / ReLU epilogue in f32
    on the VPU (v5e VPU has no bf16 path); lane-dense (tb, 128) bf16 store.
    """
    wdt = w1_ref.dtype                       # bf16 weight dtype
    xa = xa_ref[...].astype(wdt)             # (tb, Dp) fused concat input
    b = b123_ref[...]                        # (3, 256) f32 biases

    # Layer 1: single merged matmul over the concatenated obs||act input.
    h = jnp.dot(xa, w1_ref[...], preferred_element_type=jnp.float32) + b[0:1, :]
    h = jnp.maximum(h, 0.0).astype(wdt)

    # Layer 2
    h = jnp.dot(h, w2_ref[...], preferred_element_type=jnp.float32) + b[1:2, :]
    h = jnp.maximum(h, 0.0).astype(wdt)

    # Layer 3
    h = jnp.dot(h, w3_ref[...], preferred_element_type=jnp.float32) + b[2:3, :]
    h = jnp.maximum(h, 0.0).astype(wdt)

    # Layer 4: (256 -> 1) padded to 128 lanes; b4 (SMEM scalar) lands on every
    # padded lane — only column 0 is real and is the only one returned.
    q = jnp.dot(h, w4_ref[...], preferred_element_type=jnp.float32) + b4_ref[0]
    o_ref[...] = q.astype(o_ref.dtype)


def soft_q_forward(x, a, prepared, tile_b=None):
    """JAX wrapper: batch-gridded fused Pallas MLP kernel.

    `prepared` is the output of `prepare_params` (bf16 weights, K-padded W1,
    lane-padded W4, stacked biases, SMEM scalar b4).
    """
    w1, w2, w3, w4p, b123, b4 = prepared
    B = x.shape[0]
    Dp, H = w1.shape

    # Fused concat: one contiguous (B, Dp) input for a single layer-1 matmul.
    xa = jnp.concatenate([x, a], axis=1)
    D = xa.shape[1]
    if Dp != D:
        xa = jnp.pad(xa, ((0, 0), (0, Dp - D)))

    # Grid sizing: one batch tile per TensorCore.  grid=(1,) on single-TC
    # v5e / v6e (no second step to pipeline, weights already VMEM-resident);
    # grid=(2,) on v7x / megacore so ("parallel",) splits the batch across TCs.
    if tile_b is None:
        tile_b = min(MAX_TILE_B, pl.cdiv(B, _num_tensorcores_per_device()))
    tb = max(8, -(-tile_b // 8) * 8)          # sublane-aligned batch tile
    Bp = -(-B // tb) * tb
    if Bp != B:
        xa = jnp.pad(xa, ((0, Bp - B), (0, 0)))   # padded rows -> junk Q, sliced off
    grid = (Bp // tb,)

    # Advisory cost hint for XLA's scheduler around this small custom call.
    flops = 2 * Bp * (Dp * H + H * H + H * H + H * OUT_PAD)
    itemsize_w = jnp.dtype(w1.dtype).itemsize
    bytes_w = (w1.size + w2.size + w3.size + w4p.size) * itemsize_w
    bytes_io = Bp * Dp * 4 + Bp * OUT_PAD * 2 + (b123.size + 1) * 4
    cost = pl.CostEstimate(flops=flops, transcendentals=0,
                           bytes_accessed=bytes_w + bytes_io)

    out = pl.pallas_call(
        _soft_q_kernel,
        out_shape=jax.ShapeDtypeStruct((Bp, OUT_PAD), jnp.bfloat16),
        grid=grid,
        in_specs=[
            # batch-tiled fused-concat activations
            pl.BlockSpec((tb, Dp), lambda i: (i, 0)),
            # weights: constant index_map -> resident in VMEM across the grid
            pl.BlockSpec((Dp, H), lambda i: (0, 0)),
            pl.BlockSpec((H, H), lambda i: (0, 0)),
            pl.BlockSpec((H, H), lambda i: (0, 0)),
            pl.BlockSpec((H, OUT_PAD), lambda i: (0, 0)),
            pl.BlockSpec((3, H), lambda i: (0, 0)),
            # final-layer bias as an SMEM scalar
            pl.BlockSpec(memory_space=pltpu.SMEM),
        ],
        out_specs=pl.BlockSpec((tb, OUT_PAD), lambda i: (i, 0)),
        compiler_params=pltpu.CompilerParams(
            dimension_semantics=("parallel",)),   # megacore / v7x batch split
        cost_estimate=cost,
    )(xa, w1, w2, w3, w4p, b123, b4)

    # Only column 0 of the lane-padded bf16 output is real.
    return out[:B, 0:1].astype(jnp.float32)       # (B, 1)


def init_params(key, in_dim, hidden=HIDDEN):
    """nn.Linear-style init: U(-1/sqrt(fan_in), 1/sqrt(fan_in)), f32.

    Weights are (in_features, out_features); biases are (1, out_features).
    """
    dims = [(in_dim, hidden), (hidden, hidden), (hidden, hidden), (hidden, 1)]
    params = []
    for (fan_in, fan_out) in dims:
        key, kw, kb = jax.random.split(key, 3)
        bound = 1.0 / jnp.sqrt(jnp.float32(fan_in))
        w = jax.random.uniform(kw, (fan_in, fan_out), jnp.float32, -bound, bound)
        b = jax.random.uniform(kb, (1, fan_out), jnp.float32, -bound, bound)
        params.extend([w, b])
    return tuple(params)


def prepare_params(params, weight_dtype=jnp.bfloat16):
    """Repack raw f32 params into the kernel's operand layout."""
    w1, b1, w2, b2, w3, b3, w4, b4 = params
    D, H = w1.shape
    Dp = -(-D // 8) * 8                                      # sublane-align K
    w1p = jnp.zeros((Dp, H), weight_dtype).at[:D, :].set(
        w1.astype(weight_dtype))                             # (Dp, 256)
    w2b = w2.astype(weight_dtype)                            # (256, 256)
    w3b = w3.astype(weight_dtype)                            # (256, 256)
    w4p = jnp.zeros((H, OUT_PAD), weight_dtype).at[:, 0:1].set(
        w4.astype(weight_dtype))                             # (256, 128), col 0 real
    b123 = jnp.concatenate([b1, b2, b3], axis=0)             # (3, 256) f32
    b4s = b4.reshape((1,)).astype(jnp.float32)               # (1,) SMEM scalar
    return (w1p, w2b, w3b, w4p, b123, b4s)


def reference_forward(x, a, prepared):
    """Pure-JAX reference using the same bf16 weights / bf16 activations."""
    w1, w2, w3, w4p, b123, b4 = prepared
    wdt = w1.dtype
    xa = jnp.concatenate([x, a], axis=1)
    Dp = w1.shape[0]
    if Dp != xa.shape[1]:
        xa = jnp.pad(xa, ((0, 0), (0, Dp - xa.shape[1])))
    h = jnp.dot(xa.astype(wdt), w1, preferred_element_type=jnp.float32) + b123[0:1, :]
    h = jnp.maximum(h, 0.0).astype(wdt)
    h = jnp.dot(h, w2, preferred_element_type=jnp.float32) + b123[1:2, :]
    h = jnp.maximum(h, 0.0).astype(wdt)
    h = jnp.dot(h, w3, preferred_element_type=jnp.float32) + b123[2:3, :]
    h = jnp.maximum(h, 0.0).astype(wdt)
    q = jnp.dot(h, w4p, preferred_element_type=jnp.float32) + b4[0]
    return q[:, 0:1]


if __name__ == "__main__":
    # ManiSkill SAC critic shapes: flattened obs dim 32, action dim 8,
    # SAC-style training batch of 256.
    B, OBS_DIM, ACT_DIM = 256, 32, 8
    key = jax.random.PRNGKey(0)
    k_obs, k_act, k_params = jax.random.split(key, 3)

    x = jax.random.normal(k_obs, (B, OBS_DIM), jnp.float32)
    a = jax.random.normal(k_act, (B, ACT_DIM), jnp.float32)
    raw_params = init_params(k_params, OBS_DIM + ACT_DIM, hidden=HIDDEN)
    prepared = prepare_params(raw_params)

    q = soft_q_forward(x, a, prepared)
    jax.block_until_ready(q)

    q_ref = reference_forward(x, a, prepared)
    assert q.shape == (B, 1), q.shape
    assert jnp.allclose(q, q_ref, atol=1e-2, rtol=1e-2), "mismatch vs reference"

    print("KERNEL_OK")
</pallas_src>

<mosaic_0001>
module attributes {stable_mosaic.version = 11 : i64} {
  func.func @_soft_q_kernel(%arg0: i32, %arg1: memref<128x40xf32, #tpu.memory_space<vmem>>, %arg2: memref<40x256xbf16, #tpu.memory_space<vmem>>, %arg3: memref<256x256xbf16, #tpu.memory_space<vmem>>, %arg4: memref<256x256xbf16, #tpu.memory_space<vmem>>, %arg5: memref<256x128xbf16, #tpu.memory_space<vmem>>, %arg6: memref<3x256xf32, #tpu.memory_space<vmem>>, %arg7: memref<1xf32, #tpu.memory_space<smem>>, %arg8: memref<128x128xbf16, #tpu.memory_space<vmem>>) attributes {dimension_semantics = [#tpu.dimension_semantics<parallel>], iteration_bounds = array<i64: 2>, scalar_prefetch = 0 : i64, scratch_operands = 0 : i64, tpu.core_type = #tpu.core_type<tc>, window_params = [{transform_indices = @transform_0, window_bounds = array<i64: 128, 40>}, {pipeline_mode = #tpu.pipeline_mode<synchronous>, transform_indices = @transform_1, window_bounds = array<i64: 40, 256>}, {pipeline_mode = #tpu.pipeline_mode<synchronous>, transform_indices = @transform_2, window_bounds = array<i64: 256, 256>}, {pipeline_mode = #tpu.pipeline_mode<synchronous>, transform_indices = @transform_3, window_bounds = array<i64: 256, 256>}, {pipeline_mode = #tpu.pipeline_mode<synchronous>, transform_indices = @transform_4, window_bounds = array<i64: 256, 128>}, {pipeline_mode = #tpu.pipeline_mode<synchronous>, transform_indices = @transform_5, window_bounds = array<i64: 3, 256>}, {transform_indices = @transform_6, window_bounds = array<i64: 1>}, {transform_indices = @transform_7, window_bounds = array<i64: 128, 128>}]} {
    %c0 = arith.constant 0 : index
    %c0_0 = arith.constant 0 : index
    %0 = vector.load %arg1[%c0, %c0_0] : memref<128x40xf32, #tpu.memory_space<vmem>>, vector<128x40xf32>
    %1 = arith.truncf %0 : vector<128x40xf32> to vector<128x40xbf16>
    %c0_1 = arith.constant 0 : index
    %c0_2 = arith.constant 0 : index
    %2 = vector.load %arg6[%c0_1, %c0_2] : memref<3x256xf32, #tpu.memory_space<vmem>>, vector<3x256xf32>
    %c0_3 = arith.constant 0 : index
    %c0_4 = arith.constant 0 : index
    %3 = vector.load %arg2[%c0_3, %c0_4] : memref<40x256xbf16, #tpu.memory_space<vmem>>, vector<40x256xbf16>
    %cst = arith.constant dense<0.000000e+00> : vector<128x256xf32>
    %4 = tpu.matmul %1, %3, %cst {dimension_numbers = #tpu.dot_dimension_numbers<[1], [0], [0], [1], [0, 0, 1, 1], [], []>} : vector<128x40xbf16>, vector<40x256xbf16>, vector<128x256xf32> -> vector<128x256xf32>
    %5 = vector.extract_strided_slice %2 {offsets = [0, 0], sizes = [1, 256], strides = [1, 1]} : vector<3x256xf32> to vector<1x256xf32>
    %6 = vector.broadcast %5 : vector<1x256xf32> to vector<128x256xf32>
    %7 = arith.addf %4, %6 : vector<128x256xf32>
    %cst_5 = arith.constant 0.000000e+00 : f32
    %8 = vector.broadcast %cst_5 : f32 to vector<128x256xf32>
    %9 = arith.maximumf %7, %8 : vector<128x256xf32>
    %10 = arith.truncf %9 : vector<128x256xf32> to vector<128x256xbf16>
    %c0_6 = arith.constant 0 : index
    %c0_7 = arith.constant 0 : index
    %11 = vector.load %arg3[%c0_6, %c0_7] : memref<256x256xbf16, #tpu.memory_space<vmem>>, vector<256x256xbf16>
    %cst_8 = arith.constant dense<0.000000e+00> : vector<128x256xf32>
    %12 = tpu.matmul %10, %11, %cst_8 {dimension_numbers = #tpu.dot_dimension_numbers<[1], [0], [0], [1], [0, 0, 1, 1], [], []>} : vector<128x256xbf16>, vector<256x256xbf16>, vector<128x256xf32> -> vector<128x256xf32>
    %13 = vector.extract_strided_slice %2 {offsets = [1, 0], sizes = [1, 256], strides = [1, 1]} : vector<3x256xf32> to vector<1x256xf32>
    %14 = vector.broadcast %13 : vector<1x256xf32> to vector<128x256xf32>
    %15 = arith.addf %12, %14 : vector<128x256xf32>
    %cst_9 = arith.constant 0.000000e+00 : f32
    %16 = vector.broadcast %cst_9 : f32 to vector<128x256xf32>
    %17 = arith.maximumf %15, %16 : vector<128x256xf32>
    %18 = arith.truncf %17 : vector<128x256xf32> to vector<128x256xbf16>
    %c0_10 = arith.constant 0 : index
    %c0_11 = arith.constant 0 : index
    %19 = vector.load %arg4[%c0_10, %c0_11] : memref<256x256xbf16, #tpu.memory_space<vmem>>, vector<256x256xbf16>
    %cst_12 = arith.constant dense<0.000000e+00> : vector<128x256xf32>
    %20 = tpu.matmul %18, %19, %cst_12 {dimension_numbers = #tpu.dot_dimension_numbers<[1], [0], [0], [1], [0, 0, 1, 1], [], []>} : vector<128x256xbf16>, vector<256x256xbf16>, vector<128x256xf32> -> vector<128x256xf32>
    %21 = vector.extract_strided_slice %2 {offsets = [2, 0], sizes = [1, 256], strides = [1, 1]} : vector<3x256xf32> to vector<1x256xf32>
    %22 = vector.broadcast %21 : vector<1x256xf32> to vector<128x256xf32>
    %23 = arith.addf %20, %22 : vector<128x256xf32>
    %cst_13 = arith.constant 0.000000e+00 : f32
    %24 = vector.broadcast %cst_13 : f32 to vector<128x256xf32>
    %25 = arith.maximumf %23, %24 : vector<128x256xf32>
    %26 = arith.truncf %25 : vector<128x256xf32> to vector<128x256xbf16>
    %c0_14 = arith.constant 0 : index
    %c0_15 = arith.constant 0 : index
    %27 = vector.load %arg5[%c0_14, %c0_15] : memref<256x128xbf16, #tpu.memory_space<vmem>>, vector<256x128xbf16>
    %cst_16 = arith.constant dense<0.000000e+00> : vector<128x128xf32>
    %28 = tpu.matmul %26, %27, %cst_16 {dimension_numbers = #tpu.dot_dimension_numbers<[1], [0], [0], [1], [0, 0, 1, 1], [], []>} : vector<128x256xbf16>, vector<256x128xbf16>, vector<128x128xf32> -> vector<128x128xf32>
    %c0_17 = arith.constant 0 : index
    %29 = memref.load %arg7[%c0_17] : memref<1xf32, #tpu.memory_space<smem>>
    %30 = vector.broadcast %29 : f32 to vector<128x128xf32>
    %31 = arith.addf %28, %30 : vector<128x128xf32>
    %32 = arith.truncf %31 : vector<128x128xf32> to vector<128x128xbf16>
    %c0_18 = arith.constant 0 : index
    %c0_19 = arith.constant 0 : index
    %33 = vector.load %arg8[%c0_18, %c0_19] : memref<128x128xbf16, #tpu.memory_space<vmem>>, vector<128x128xbf16>
    tpu.vector_store %arg8[%c0_18, %c0_19], %32 {strides = array<i32>} : memref<128x128xbf16, #tpu.memory_space<vmem>>, vector<128x128xbf16>,
    return
  }
  func.func @transform_0(%arg0: i32) -> (i32, i32) {
    %c0_i32 = arith.constant 0 : i32
    %c0_i32_0 = arith.constant 0 : i32
    return %arg0, %c0_i32 : i32, i32
  }
  func.func @transform_1(%arg0: i32) -> (i32, i32) {
    %c0_i32 = arith.constant 0 : i32
    %c0_i32_0 = arith.constant 0 : i32
    %c0_i32_1 = arith.constant 0 : i32
    return %c0_i32, %c0_i32_0 : i32, i32
  }
  func.func @transform_2(%arg0: i32) -> (i32, i32) {
    %c0_i32 = arith.constant 0 : i32
    %c0_i32_0 = arith.constant 0 : i32
    %c0_i32_1 = arith.constant 0 : i32
    return %c0_i32, %c0_i32_0 : i32, i32
  }
  func.func @transform_3(%arg0: i32) -> (i32, i32) {
    %c0_i32 = arith.constant 0 : i32
    %c0_i32_0 = arith.constant 0 : i32
    %c0_i32_1 = arith.constant 0 : i32
    return %c0_i32, %c0_i32_0 : i32, i32
  }
  func.func @transform_4(%arg0: i32) -> (i32, i32) {
    %c0_i32 = arith.constant 0 : i32
    %c0_i32_0 = arith.constant 0 : i32
    %c0_i32_1 = arith.constant 0 : i32
    return %c0_i32, %c0_i32_0 : i32, i32
  }
  func.func @transform_5(%arg0: i32) -> (i32, i32) {
    %c0_i32 = arith.constant 0 : i32
    %c0_i32_0 = arith.constant 0 : i32
    %c0_i32_1 = arith.constant 0 : i32
    return %c0_i32, %c0_i32_0 : i32, i32
  }
  func.func @transform_6(%arg0: i32) -> i32 {
    %c0_i32 = arith.constant 0 : i32
    %c0_i32_0 = arith.constant 0 : i32
    return %c0_i32 : i32
  }
  func.func @transform_7(%arg0: i32) -> (i32, i32) {
    %c0_i32 = arith.constant 0 : i32
    %c0_i32_0 = arith.constant 0 : i32
    return %arg0, %c0_i32 : i32, i32
  }
}

</mosaic_0001>

<llo_original>
// kernel: tpu_custom_call.1
$region0: #{tpu_custom_call.1}
  #allocation0 [shape = 'u32[]', space=smem, size = 0x4, offset = 0x4, fixed_abs, tag = 'smem constant byte address 0x4 - core index']
  #allocation1 [shape = 'u32[144,128]{1,0:T(1,128)}', space=vmem, size = 0x12000, scoped, tag = 'internal scratch']
  #allocation2 [shape = 'f32[1]{0:T(128)S(6)}', space=smem, size = 0x200, scoped, tag = 'scoped memory for tpu_custom_call.1']
  %s0 = inlined_call_operand.vmem [shape: f32[256,40], index: 0, kind: input, shape index: {}]
  %s1 = inlined_call_operand.vmem [shape: bf16[40,256], index: 1, kind: input, shape index: {}]
  %s2 = inlined_call_operand.vmem [shape: bf16[256,256], index: 2, kind: input, shape index: {}]
  %s3 = inlined_call_operand.hbm [shape: bf16[256,256], index: 3, kind: input, shape index: {}]
  %s4 = inlined_call_operand.hbm [shape: bf16[256,128], index: 4, kind: input, shape index: {}]
  %s5 = inlined_call_operand.vmem [shape: f32[3,256], index: 5, kind: input, shape index: {}]
  %s6 = inlined_call_operand.<no memory space> [shape: f32[1], index: 6, kind: input, shape index: {}]
  %s7 = inlined_call_operand.hbm [shape: bf16[256,128], index: 7, kind: output, shape index: {}]
  %s8 = sld [smem:[#allocation0]]
  $region69: #{tpu_custom_call.1} parent=0
    _
  %s10 = ssub.s32 1, %s8
  %s11 = scalar_select 0, %s10, %s8
  %12 = sst [smem:[#allocation2]] %s6
  $region1: #{tpu_custom_call.1} parent=0
    #allocation3 [shape = 'u8[131072]{0}', space=vmem, size = 0x20000, scoped, tag = 'input window, operand 3, single buffered']
    #allocation4 [shape = 's32[2]{0}', space=sflag, size = 0x8, scoped, tag = 'scoped memory for tpu_custom_call.1']
    #allocation5 [shape = 's32[2]{0}', space=sflag, size = 0x8, scoped, tag = 'scoped memory for tpu_custom_call.1']
    #allocation6 [shape = 'u8[65536]{0}', space=vmem, size = 0x10000, scoped, tag = 'input window, operand 4, single buffered']
    #allocation7 [shape = 's32[1]{0}', space=sflag, size = 0x4, scoped, tag = 'scoped memory for tpu_custom_call.1']
    #allocation8 [shape = 'u8[65536]{0}', space=vmem, size = 0x10000, scoped, tag = 'output window, operand 0']
    %13 = vsyncpa [#allocation4], 0
    %14 = vsyncpa [#allocation7], 0
    %15 = vsyncpa [#allocation5], 0
    %s16 = scalar_lea.sflag [#allocation5], 1
    %17 = vsyncpa %s16, 0
    loop: start=0, step=1, limit=4
    $region2: #{tpu_custom_call.1} parent=1 // loop_pre_header
      _
    $region3: #{tpu_custom_call.1} parent=1 // loop_header
      %s19 = sphi 0, %s23
      %p20 = scmp.ge.s32.totalorder %s19, 4
      %s29 = sphi 0, %s31
      %s32 = sphi 0, %s29
      %s33 = sphi 0, %s32
      %s49 = sphi 0, %s33
      %s53 = sphi 0, %s53
      %s55 = sphi 0, %s53
      %s56 = sphi 0, %s55
      %s70 = sphi 0, %s56
      %s74 = sphi 0, %s74
      %s76 = sphi 0, %s74
      %s77 = sphi 0, %s76
      %s91 = sphi 0, %s77
      %s95 = sphi 0, %s95
      %s97 = sphi 0, %s95
      %s98 = sphi 0, %s97
      %s112 = sphi 0, %s98
      %s116 = sphi 0, %s116
      %s118 = sphi 0, %s116
      %s119 = sphi 0, %s118
      %s133 = sphi 0, %s119
      %s137 = sphi 0, %s137
      %s139 = sphi 0, %s137
      %s140 = sphi 0, %s139
      %s154 = sphi 0, %s140
      %s158 = sphi 0, %s158
      %s160 = sphi 0, %s158
      %s161 = sphi 0, %s160
      %s175 = sphi 0, %s161
      %s181 = sphi 0, %s183
      %s184 = sphi 0, %s181
      %s185 = sphi 0, %s184
      %s201 = sphi 0, %s185
    $region4: #{tpu_custom_call.1} parent=1 // loop_header_branch
      %22 = sbr.rel (%p20) target = $region8
    $region5: #{tpu_custom_call.1} parent=1 // loop_body
      %s24 = ssub.s32 %s19, 1
      %s25 = ssub.s32 %s19, 2
      %s26 = sadd.s32 %s19, 1
      %s27 = ssub.s32 %s19, %s26
      %p28 = scmp.eq.s32.totalorder %s27, 0
      %s30 = sadd.s32 %s29, 1
      %s31 = scalar_select %p28, %s29, %s30
      %p34 = pneg %p28
      %p35 = scmp.eq.s32.totalorder %s19, 1
      %p36 = por %p34, %p35
      %p37 = scmp.ne.s32.totalorder %s29, %s32
      %p38 = scmp.eq.s32.totalorder %s19, 0
      %p39 = por %p37, %p38
      %p40 = scmp.ne.s32.totalorder %s29, %s32
      %p41 = scmp.eq.s32.totalorder %s24, 1
      %p42 = por %p40, %p41
      %p43 = scmp.ne.s32.totalorder %s32, %s33
      %p44 = scmp.eq.s32.totalorder %s24, 0
      %p45 = por %p43, %p44
      %p46 = scmp.ne.s32.totalorder %s32, %s33
      %p47 = scmp.eq.s32.totalorder %s25, 1
      %p48 = por %p46, %p47
      %p50 = scmp.ne.s32.totalorder %s33, %s49
      %p51 = scmp.eq.s32.totalorder %s25, 0
      %p52 = por %p50, %p51
      %s54 = sadd.s32 %s53, 1
      %p57 = scmp.eq.s32.totalorder %s19, 1
      %p58 = scmp.ne.s32.totalorder %s53, %s55
      %p59 = scmp.eq.s32.totalorder %s19, 0
      %p60 = por %p58, %p59
      %p61 = scmp.ne.s32.totalorder %s53, %s55
      %p62 = scmp.eq.s32.totalorder %s24, 1
      %p63 = por %p61, %p62
      %p64 = scmp.ne.s32.totalorder %s55, %s56
      %p65 = scmp.eq.s32.totalorder %s24, 0
      %p66 = por %p64, %p65
      %p67 = scmp.ne.s32.totalorder %s55, %s56
      %p68 = scmp.eq.s32.totalorder %s25, 1
      %p69 = por %p67, %p68
      %p71 = scmp.ne.s32.totalorder %s56, %s70
      %p72 = scmp.eq.s32.totalorder %s25, 0
      %p73 = por %p71, %p72
      %s75 = sadd.s32 %s74, 1
      %p78 = scmp.eq.s32.totalorder %s19, 1
      %p79 = scmp.ne.s32.totalorder %s74, %s76
      %p80 = scmp.eq.s32.totalorder %s19, 0
      %p81 = por %p79, %p80
      %p82 = scmp.ne.s32.totalorder %s74, %s76
      %p83 = scmp.eq.s32.totalorder %s24, 1
      %p84 = por %p82, %p83
      %p85 = scmp.ne.s32.totalorder %s76, %s77
      %p86 = scmp.eq.s32.totalorder %s24, 0
      %p87 = por %p85, %p86
      %p88 = scmp.ne.s32.totalorder %s76, %s77
      %p89 = scmp.eq.s32.totalorder %s25, 1
      %p90 = por %p88, %p89
      %p92 = scmp.ne.s32.totalorder %s77, %s91
      %p93 = scmp.eq.s32.totalorder %s25, 0
      %p94 = por %p92, %p93
      %s96 = sadd.s32 %s95, 1
      %p99 = scmp.eq.s32.totalorder %s19, 1
      %p100 = scmp.ne.s32.totalorder %s95, %s97
      %p101 = scmp.eq.s32.totalorder %s19, 0
      %p102 = por %p100, %p101
      %p103 = scmp.ne.s32.totalorder %s95, %s97
      %p104 = scmp.eq.s32.totalorder %s24, 1
      %p105 = por %p103, %p104
      %p106 = scmp.ne.s32.totalorder %s97, %s98
      %p107 = scmp.eq.s32.totalorder %s24, 0
      %p108 = por %p106, %p107
      %p109 = scmp.ne.s32.totalorder %s97, %s98
      %p110 = scmp.eq.s32.totalorder %s25, 1
      %p111 = por %p109, %p110
      %p113 = scmp.ne.s32.totalorder %s98, %s112
      %p114 = scmp.eq.s32.totalorder %s25, 0
      %p115 = por %p113, %p114
      %s117 = sadd.s32 %s116, 1
      %p120 = scmp.eq.s32.totalorder %s19, 1
      %p121 = scmp.ne.s32.totalorder %s116, %s118
      %p122 = scmp.eq.s32.totalorder %s19, 0
      %p123 = por %p121, %p122
      %p124 = scmp.ne.s32.totalorder %s116, %s118
      %p125 = scmp.eq.s32.totalorder %s24, 1
      %p126 = por %p124, %p125
      %p127 = scmp.ne.s32.totalorder %s118, %s119
      %p128 = scmp.eq.s32.totalorder %s24, 0
      %p129 = por %p127, %p128
      %p130 = scmp.ne.s32.totalorder %s118, %s119
      %p131 = scmp.eq.s32.totalorder %s25, 1
      %p132 = por %p130, %p131
      %p134 = scmp.ne.s32.totalorder %s119, %s133
      %p135 = scmp.eq.s32.totalorder %s25, 0
      %p136 = por %p134, %p135
      %s138 = sadd.s32 %s137, 1
      %p141 = scmp.eq.s32.totalorder %s19, 1
      %p142 = scmp.ne.s32.totalorder %s137, %s139
      %p143 = scmp.eq.s32.totalorder %s19, 0
      %p144 = por %p142, %p143
      %p145 = scmp.ne.s32.totalorder %s137, %s139
      %p146 = scmp.eq.s32.totalorder %s24, 1
      %p147 = por %p145, %p146
      %p148 = scmp.ne.s32.totalorder %s139, %s140
      %p149 = scmp.eq.s32.totalorder %s24, 0
      %p150 = por %p148, %p149
      %p151 = scmp.ne.s32.totalorder %s139, %s140
      %p152 = scmp.eq.s32.totalorder %s25, 1
      %p153 = por %p151, %p152
      %p155 = scmp.ne.s32.totalorder %s140, %s154
      %p156 = scmp.eq.s32.totalorder %s25, 0
      %p157 = por %p155, %p156
      %s159 = sadd.s32 %s158, 1
      %p162 = scmp.eq.s32.totalorder %s19, 1
      %p163 = scmp.ne.s32.totalorder %s158, %s160
      %p164 = scmp.eq.s32.totalorder %s19, 0
      %p165 = por %p163, %p164
      %p166 = scmp.ne.s32.totalorder %s158, %s160
      %p167 = scmp.eq.s32.totalorder %s24, 1
      %p168 = por %p166, %p167
      %p169 = scmp.ne.s32.totalorder %s160, %s161
      %p170 = scmp.eq.s32.totalorder %s24, 0
      %p171 = por %p169, %p170
      %p172 = scmp.ne.s32.totalorder %s160, %s161
      %p173 = scmp.eq.s32.totalorder %s25, 1
      %p174 = por %p172, %p173
      %p176 = scmp.ne.s32.totalorder %s161, %s175
      %p177 = scmp.eq.s32.totalorder %s25, 0
      %p178 = por %p176, %p177
      %s179 = ssub.s32 %s19, %s26
      %p180 = scmp.eq.s32.totalorder %s179, 0
      %s182 = sadd.s32 %s181, 1
      %s183 = scalar_select %p180, %s181, %s182
      %p186 = pneg %p180
      %p187 = scmp.eq.s32.totalorder %s19, 1
      %p188 = por %p186, %p187
      %p189 = scmp.ne.s32.totalorder %s181, %s184
      %p190 = scmp.eq.s32.totalorder %s19, 0
      %p191 = por %p189, %p190
      %p192 = scmp.ne.s32.totalorder %s181, %s184
      %p193 = scmp.eq.s32.totalorder %s24, 1
      %p194 = por %p192, %p193
      %p195 = scmp.ne.s32.totalorder %s184, %s185
      %p196 = scmp.eq.s32.totalorder %s24, 0
      %p197 = por %p195, %p196
      %p198 = scmp.ne.s32.totalorder %s184, %s185
      %p199 = scmp.eq.s32.totalorder %s25, 1
      %p200 = por %p198, %p199
      %p202 = scmp.ne.s32.totalorder %s185, %s201
      %p203 = scmp.eq.s32.totalorder %s25, 0
      %p204 = por %p202, %p203
      %p205 = scmp.le.s32.totalorder 1, %s19
      %p206 = scmp.lt.s32.totalorder %s19, 3
      %p207 = pnand %p205, %p206
      %p208 = pneg %p207
      // Predicated region
      $region9: #{tpu_custom_call.1} parent=5 // pred_check
        _
      $region10: #{tpu_custom_call.1} parent=5 // pred_check_branch
        %210 = sbr.rel (%p207) target = $region12
      $region11: #{tpu_custom_call.1} parent=5 // pred_region
        %s211 = ssub.s32 %s19, 1
        // Predicated region
        $region13: #{tpu_custom_call.1} parent=11 // pred_check
          %p212 = pneg %p66
        $region14: #{tpu_custom_call.1} parent=11 // pred_check_branch
          %214 = sbr.rel (%p212) target = $region16
        $region15: #{tpu_custom_call.1} parent=11 // pred_region
          _
        $region16: #{tpu_custom_call.1} parent=11 // pred_fallthru
          _
        // Predicated region
        $region17: #{tpu_custom_call.1} parent=11 // pred_check
          %p215 = pneg %p87
        $region18: #{tpu_custom_call.1} parent=11 // pred_check_branch
          %217 = sbr.rel (%p215) target = $region20
        $region19: #{tpu_custom_call.1} parent=11 // pred_region
          _
        $region20: #{tpu_custom_call.1} parent=11 // pred_fallthru
          _
        // Predicated region
        $region21: #{tpu_custom_call.1} parent=11 // pred_check
          %p218 = pneg %p108
        $region22: #{tpu_custom_call.1} parent=11 // pred_check_branch
          %220 = sbr.rel (%p218) target = $region24
        $region23: #{tpu_custom_call.1} parent=11 // pred_region
          %s222 = ssub.s32 4096, 4096
          %223 = vsyncadd [#allocation4], %s222
          %s224 = sshll.u32 [#allocation3], 4
          %s225 = int_to_ptr.vmem [resolvable:$true] %s224
          %230 = dma.hbm_to_vmem [thread:$0]  %s3, 4096, %s225, [#allocation4], 128, 128, 8
        $region24: #{tpu_custom_call.1} parent=11 // pred_fallthru
          _
        // Predicated region
        $region25: #{tpu_custom_call.1} parent=11 // pred_check
          %p231 = pneg %p129
        $region26: #{tpu_custom_call.1} parent=11 // pred_check_branch
          %233 = sbr.rel (%p231) target = $region28
        $region27: #{tpu_custom_call.1} parent=11 // pred_region
          %s235 = ssub.s32 2048, 2048
          %236 = vsyncadd [#allocation7], %s235
          %s237 = sshll.u32 [#allocation6], 4
          %s238 = int_to_ptr.vmem [resolvable:$true] %s237
          %243 = dma.hbm_to_vmem [thread:$0]  %s4, 2048, %s238, [#allocation7], 64, 64, 4
        $region28: #{tpu_custom_call.1} parent=11 // pred_fallthru
          _
        // Predicated region
        $region29: #{tpu_custom_call.1} parent=11 // pred_check
          %p244 = pneg %p150
        $region30: #{tpu_custom_call.1} parent=11 // pred_check_branch
          %246 = sbr.rel (%p244) target = $region32
        $region31: #{tpu_custom_call.1} parent=11 // pred_region
          _
        $region32: #{tpu_custom_call.1} parent=11 // pred_fallthru
          _
        // Predicated region
        $region33: #{tpu_custom_call.1} parent=11 // pred_check
          %p247 = pneg %p171
        $region34: #{tpu_custom_call.1} parent=11 // pred_check_branch
          %249 = sbr.rel (%p247) target = $region36
        $region35: #{tpu_custom_call.1} parent=11 // pred_region
          _
        $region36: #{tpu_custom_call.1} parent=11 // pred_fallthru
          _
      $region12: #{tpu_custom_call.1} parent=5 // pred_fallthru
        _
      %p250 = scmp.lt.s32.totalorder %s19, 2
      // Predicated region
      $region37: #{tpu_custom_call.1} parent=5 // pred_check
        %p251 = pneg %p250
      $region38: #{tpu_custom_call.1} parent=5 // pred_check_branch
        %253 = sbr.rel (%p251) target = $region40
      $region39: #{tpu_custom_call.1} parent=5 // pred_region
        // Predicated region
        $region41: #{tpu_custom_call.1} parent=39 // pred_check
          %p254 = pneg %p39
        $region42: #{tpu_custom_call.1} parent=39 // pred_check_branch
          %256 = sbr.rel (%p254) target = $region44
        $region43: #{tpu_custom_call.1} parent=39 // pred_region
          %s257 = smul.u32 16, %s19
          %p258 = scmp.lt.s32.totalorder %s257, 31
          %s259 = scalar_select %p258, %s257, 31
          %s260 = smul.addr %s259, 8
          %s261 = scalar_lea.vmem %s0, %s260
          %s262 = smul.u32 16, %s19
        $region44: #{tpu_custom_call.1} parent=39 // pred_fallthru
          _
      $region40: #{tpu_custom_call.1} parent=5 // pred_fallthru
        _
      %p263 = scmp.le.s32.totalorder 1, %s19
      %p264 = scmp.lt.s32.totalorder %s19, 3
      %p265 = pnand %p263, %p264
      %p266 = pneg %p265
      // Predicated region
      $region45: #{tpu_custom_call.1} parent=5 // pred_check
        _
      $region46: #{tpu_custom_call.1} parent=5 // pred_check_branch
        %268 = sbr.rel (%p265) target = $region48
      $region47: #{tpu_custom_call.1} parent=5 // pred_region
        %s269 = ssub.s32 %s19, 1
        // Predicated region
        $region49: #{tpu_custom_call.1} parent=47 // pred_check
          %p270 = pneg %p108
        $region50: #{tpu_custom_call.1} parent=47 // pred_check_branch
          %272 = sbr.rel (%p270) target = $region52
        $region51: #{tpu_custom_call.1} parent=47 // pred_region
          %273 = dma.done [#allocation4], 4096
        $region52: #{tpu_custom_call.1} parent=47 // pred_fallthru
          _
        // Predicated region
        $region53: #{tpu_custom_call.1} parent=47 // pred_check
          %p274 = pneg %p129
        $region54: #{tpu_custom_call.1} parent=47 // pred_check_branch
          %276 = sbr.rel (%p274) target = $region56
        $region55: #{tpu_custom_call.1} parent=47 // pred_region
          %277 = dma.done [#allocation7], 2048
        $region56: #{tpu_custom_call.1} parent=47 // pred_fallthru
          _
        %s278 = smul.u32 16, %s24
        %p279 = scmp.lt.s32.totalorder %s278, 31
        %s280 = scalar_select %p279, %s278, 31
        %s281 = smul.addr %s280, 8
        %s282 = scalar_lea.vmem %s0, %s281
        %p283 = pneg %p45
        %p284 = pneg %p42
        %p285 = pneg %p66
        %p286 = pneg %p63
        %p287 = pneg %p87
        %p288 = pneg %p84
        %p289 = pneg %p108
        %p290 = pneg %p105
        %p291 = pneg %p129
        %p292 = pneg %p126
        %p293 = pneg %p150
        %p294 = pneg %p147
        %p295 = pneg %p171
        %p296 = pneg %p168
        %p297 = pneg %p197
        %p298 = pneg %p194
        %s299 = sand.u32 %s184, 1
        %s300 = scalar_lea.sflag [#allocation5], %s299
        %s301 = sand.u32 %s184, 1
        %s302 = smul.addr %s301, 64
        %s303 = scalar_lea.vmem [#allocation8], %s302
        %s304 = smul.u32 16, %s24
        %p305 = scmp.lt.s32.totalorder %s304, 31
        %s306 = scalar_select %p305, %s304, 31
        %s307 = smul.addr %s306, 8
        %s308 = scalar_lea.vmem %s0, %s307
        %s309 = smul.u32 16, %s24
        %s310 = smul.u32 16, %s24
        %v312 = vld [vmem:[%s308] sm:$0xff]
        %v313 = vld [vmem:[%s308 + $0x8] sm:$0xff]
        %v314 = vld [vmem:[%s308 + $0x10] sm:$0xff]
        %v315 = vld [vmem:[%s308 + $0x18] sm:$0xff]
        %v316 = vld [vmem:[%s308 + $0x20] sm:$0xff]
        %v317 = vld [vmem:[%s308 + $0x28] sm:$0xff]
        %v318 = vld [vmem:[%s308 + $0x30] sm:$0xff]
        %v319 = vld [vmem:[%s308 + $0x38] sm:$0xff]
        %v320 = vld [vmem:[%s308 + $0x40] sm:$0xff]
        %v321 = vld [vmem:[%s308 + $0x48] sm:$0xff]
        %v322 = vld [vmem:[%s308 + $0x50] sm:$0xff]
        %v323 = vld [vmem:[%s308 + $0x58] sm:$0xff]
        %v324 = vld [vmem:[%s308 + $0x60] sm:$0xff]
        %v325 = vld [vmem:[%s308 + $0x68] sm:$0xff]
        %v326 = vld [vmem:[%s308 + $0x70] sm:$0xff]
        %v327 = vld [vmem:[%s308 + $0x78] sm:$0xff]
        %v328 = vpack.c.bf16 %v313, %v312
        %v329 = vpack.c.bf16 %v315, %v314
        %v330 = vpack.c.bf16 %v317, %v316
        %v331 = vpack.c.bf16 %v319, %v318
        %v332 = vpack.c.bf16 %v321, %v320
        %v333 = vpack.c.bf16 %v323, %v322
        %v334 = vpack.c.bf16 %v325, %v324
        %v335 = vpack.c.bf16 %v327, %v326
        %v336 = vld [vmem:[%s5] sm:$0x77]
        %v337 = vld [vmem:[%s1] sm:$0xff]
        %v338 = vld [vmem:[%s1 + $0x8] sm:$0xff]
        %v339 = vld [vmem:[%s1 + $0x10] sm:$0xff]
        %v340 = vld [vmem:[%s1 + $0x18] sm:$0xff]
        %v341 = vld [vmem:[%s1 + $0x20] sm:$0xff]
        %v343 = vlaneseq
        %v344 = vshrl.u32 %v343, 7
        %v345 = vsub.s32 0, %v344
        %v346 = vrot.slane %v336, %v345
        %v347 = vlaneseq
        %v348 = vshrl.u32 %v347, 7
        %v349 = vsub.s32 4, %v348
        %v350 = vrot.slane %v336, %v349
        %v353 = vlaneseq
        %v354 = vshrl.u32 %v353, 7
        %v355 = vsub.s32 0, %v354
        %v356 = vrot.slane %v346, %v355
        %v357 = vlaneseq
        %v358 = vshrl.u32 %v357, 7
        %v359 = vsub.s32 0, %v358
        %v360 = vrot.slane %v350, %v359
        %v366 = vunpack.c.l.b16 %v337
        %v367 = vunpack.c.h.b16 %v337
        %v368 = vunpack.c.l.b16 %v338
        %v369 = vunpack.c.h.b16 %v338
        %v370 = vunpack.c.l.b16 %v339
        %v371 = vunpack.c.h.b16 %v339
        %v372 = vunpack.c.l.b16 %v340
        %v373 = vunpack.c.h.b16 %v340
        %v374 = vunpack.c.l.b16 %v341
        %v375 = vunpack.c.h.b16 %v341
        %v376 = vpack.c.b16 %v368, %v366
        %v377 = vpack.c.b16 %v369, %v367
        %v378 = vpack.c.b16 %v372, %v370
        %v379 = vpack.c.b16 %v373, %v371
        %v380 = vpack.c.b16 %v374, %v374
        %v381 = vpack.c.b16 %v375, %v375
        %vm386 = vcmask 326656
        %v388 = vsel %vm386, %v328, 0
        %v391 = vsel %vm386, %v329, 0
        %v394 = vsel %vm386, %v330, 0
        %v397 = vsel %vm386, %v331, 0
        %v400 = vsel %vm386, %v332, 0
        %v403 = vsel %vm386, %v333, 0
        %v406 = vsel %vm386, %v334, 0
        %v409 = vsel %vm386, %v335, 0
        %vm411 = vcmask 1043456
        %v413 = vsel %vm411, %v380, 0
        %v416 = vsel %vm411, %v381, 0
        %418 = vmatprep.subr.bf16.mxu0 %v377
        %419 = vmatpush1.bf16.msra.mxu0 %v376
        %420 = vmatprep.subr.bf16.mxu0 %v379
        %421 = vmatpush1.bf16.msra.mxu0 %v378
        %422 = vmatprep.subr.bf16.mxu0 %v416
        %423 = vmatpush1.bf16.msra.mxu0 %v413
        %424 = vmatprep.subr.bf16.mxu0 0
        %425 = vmatpush1.bf16.msra.mxu0 0
        %426 = vmatprep.subr.bf16.mxu0 0
        %427 = vmatpush1.bf16.msra.mxu0 0
        %428 = vmatprep.subr.bf16.mxu0 0
        %429 = vmatpush1.bf16.msra.mxu0 0
        %430 = vmatprep.subr.bf16.mxu0 0
        %431 = vmatpush1.bf16.msra.mxu0 0
        %432 = vmatprep.subr.bf16.mxu0 0
        %433 = vmatpush1.bf16.msra.mxu0 0
        %434 = vmatprep.subr.bf16.mxu0 0
        %435 = vmatpush1.bf16.msra.mxu0 0
        %436 = vmatprep.subr.bf16.mxu0 0
        %437 = vmatpush1.bf16.msra.mxu0 0
        %438 = vmatprep.subr.bf16.mxu0 0
        %439 = vmatpush1.bf16.msra.mxu0 0
        %440 = vmatprep.subr.bf16.mxu0 0
        %441 = vmatpush1.bf16.msra.mxu0 0
        %442 = vmatprep.subr.bf16.mxu0 0
        %443 = vmatpush1.bf16.msra.mxu0 0
        %444 = vmatprep.subr.bf16.mxu0 0
        %445 = vmatpush1.bf16.msra.mxu0 0
        %446 = vmatprep.subr.bf16.mxu0 0
        %447 = vmatpush1.bf16.msra.mxu0 0
        %448 = vmatprep.subr.bf16.mxu0 0
        %449 = vmatpush1.bf16.msra.mxu0 0
        %450 = vmatprep.mubr.bf16.mxu0 0
        %451 = vmatmul.mubr.bf16.gmra.mrb[0].mxu0 %v388
        %v452 = vpop.f32.mrb[0].mxu0
        %v453 = vadd.f32 %v356, %v452
        %v454 = vpop.f32.mrb[0].mxu0
        %v455 = vadd.f32 %v360, %v454
        %v456 = vpop.f32.mrb[0].mxu0
        %v457 = vadd.f32 %v356, %v456
        %v458 = vpop.f32.mrb[0].mxu0
        %v459 = vadd.f32 %v360, %v458
        %460 = vmatprep.mubr.bf16.mxu0 0
        %461 = vmatmul.mubr.bf16.gmra.mrb[0].mxu0 %v391
        %v462 = vpop.f32.mrb[0].mxu0
        %v463 = vadd.f32 %v356, %v462
        %v464 = vpop.f32.mrb[0].mxu0
        %v465 = vadd.f32 %v360, %v464
        %v466 = vpop.f32.mrb[0].mxu0
        %v467 = vadd.f32 %v356, %v466
        %v468 = vpop.f32.mrb[0].mxu0
        %v469 = vadd.f32 %v360, %v468
        %470 = vmatprep.mubr.bf16.mxu0 0
        %471 = vmatmul.mubr.bf16.gmra.mrb[0].mxu0 %v394
        %v472 = vpop.f32.mrb[0].mxu0
        %v473 = vadd.f32 %v356, %v472
        %v474 = vpop.f32.mrb[0].mxu0
        %v475 = vadd.f32 %v360, %v474
        %v476 = vpop.f32.mrb[0].mxu0
        %v477 = vadd.f32 %v356, %v476
        %v478 = vpop.f32.mrb[0].mxu0
        %v479 = vadd.f32 %v360, %v478
        %480 = vmatprep.mubr.bf16.mxu0 0
        %481 = vmatmul.mubr.bf16.gmra.mrb[0].mxu0 %v397
        %v482 = vpop.f32.mrb[0].mxu0
        %v483 = vadd.f32 %v356, %v482
        %v484 = vpop.f32.mrb[0].mxu0
        %v485 = vadd.f32 %v360, %v484
        %v486 = vpop.f32.mrb[0].mxu0
        %v487 = vadd.f32 %v356, %v486
        %v488 = vpop.f32.mrb[0].mxu0
        %v489 = vadd.f32 %v360, %v488
        %490 = vmatprep.mubr.bf16.mxu0 0
        %491 = vmatmul.mubr.bf16.gmra.mrb[0].mxu0 %v400
        %v492 = vpop.f32.mrb[0].mxu0
        %v493 = vadd.f32 %v356, %v492
        %v494 = vpop.f32.mrb[0].mxu0
        %v495 = vadd.f32 %v360, %v494
        %v496 = vpop.f32.mrb[0].mxu0
        %v497 = vadd.f32 %v356, %v496
        %v498 = vpop.f32.mrb[0].mxu0
        %v499 = vadd.f32 %v360, %v498
        %500 = vmatprep.mubr.bf16.mxu0 0
        %501 = vmatmul.mubr.bf16.gmra.mrb[0].mxu0 %v403
        %v502 = vpop.f32.mrb[0].mxu0
        %v503 = vadd.f32 %v356, %v502
        %v504 = vpop.f32.mrb[0].mxu0
        %v505 = vadd.f32 %v360, %v504
        %v506 = vpop.f32.mrb[0].mxu0
        %v507 = vadd.f32 %v356, %v506
        %v508 = vpop.f32.mrb[0].mxu0
        %v509 = vadd.f32 %v360, %v508
        %510 = vmatprep.mubr.bf16.mxu0 0
        %511 = vmatmul.mubr.bf16.gmra.mrb[0].mxu0 %v406
        %v512 = vpop.f32.mrb[0].mxu0
        %v513 = vadd.f32 %v356, %v512
        %v514 = vpop.f32.mrb[0].mxu0
        %v515 = vadd.f32 %v360, %v514
        %v516 = vpop.f32.mrb[0].mxu0
        %v517 = vadd.f32 %v356, %v516
        %v518 = vpop.f32.mrb[0].mxu0
        %v519 = vadd.f32 %v360, %v518
        %520 = vmatprep.mubr.bf16.mxu0 0
        %521 = vmatmul.mubr.bf16.gmra.mrb[0].mxu0 %v409
        %v522 = vpop.f32.mrb[0].mxu0
        %v523 = vadd.f32 %v356, %v522
        %v524 = vpop.f32.mrb[0].mxu0
        %v525 = vadd.f32 %v360, %v524
        %v526 = vpop.f32.mrb[0].mxu0
        %v527 = vadd.f32 %v356, %v526
        %v528 = vpop.f32.mrb[0].mxu0
        %v529 = vadd.f32 %v360, %v528
        %530 = vdwg.mxu0
        %v531 = vmax.f32 %v453, 0.0
        %v532 = vmax.f32 %v455, 0.0
        %v533 = vmax.f32 %v457, 0.0
        %v534 = vmax.f32 %v459, 0.0
        %v535 = vmax.f32 %v463, 0.0
        %v536 = vmax.f32 %v465, 0.0
        %v537 = vmax.f32 %v467, 0.0
        %v538 = vmax.f32 %v469, 0.0
        %v539 = vmax.f32 %v473, 0.0
        %v540 = vmax.f32 %v475, 0.0
        %v541 = vmax.f32 %v477, 0.0
        %v542 = vmax.f32 %v479, 0.0
        %v543 = vmax.f32 %v483, 0.0
        %v544 = vmax.f32 %v485, 0.0
        %v545 = vmax.f32 %v487, 0.0
        %v546 = vmax.f32 %v489, 0.0
        %v547 = vmax.f32 %v493, 0.0
        %v548 = vmax.f32 %v495, 0.0
        %v549 = vmax.f32 %v497, 0.0
        %v550 = vmax.f32 %v499, 0.0
        %v551 = vmax.f32 %v503, 0.0
        %v552 = vmax.f32 %v505, 0.0
        %v553 = vmax.f32 %v507, 0.0
        %v554 = vmax.f32 %v509, 0.0
        %v555 = vmax.f32 %v513, 0.0
        %v556 = vmax.f32 %v515, 0.0
        %v557 = vmax.f32 %v517, 0.0
        %v558 = vmax.f32 %v519, 0.0
        %v559 = vmax.f32 %v523, 0.0
        %v560 = vmax.f32 %v525, 0.0
        %v561 = vmax.f32 %v527, 0.0
        %v562 = vmax.f32 %v529, 0.0
        %v563 = vpack.c.bf16 %v533, %v531
        %v564 = vpack.c.bf16 %v534, %v532
        %v565 = vpack.c.bf16 %v537, %v535
        %v566 = vpack.c.bf16 %v538, %v536
        %v567 = vpack.c.bf16 %v541, %v539
        %v568 = vpack.c.bf16 %v542, %v540
        %v569 = vpack.c.bf16 %v545, %v543
        %v570 = vpack.c.bf16 %v546, %v544
        %v571 = vpack.c.bf16 %v549, %v547
        %v572 = vpack.c.bf16 %v550, %v548
        %v573 = vpack.c.bf16 %v553, %v551
        %v574 = vpack.c.bf16 %v554, %v552
        %v575 = vpack.c.bf16 %v557, %v555
        %v576 = vpack.c.bf16 %v558, %v556
        %v577 = vpack.c.bf16 %v561, %v559
        %v578 = vpack.c.bf16 %v562, %v560
        %v579 = vld [vmem:[%s2] sm:$0xff]
        %v580 = vld [vmem:[%s2 + $0x8] sm:$0xff]
        %v581 = vld [vmem:[%s2 + $0x10] sm:$0xff]
        %v582 = vld [vmem:[%s2 + $0x18] sm:$0xff]
        %v583 = vld [vmem:[%s2 + $0x20] sm:$0xff]
        %v584 = vld [vmem:[%s2 + $0x28] sm:$0xff]
        %v585 = vld [vmem:[%s2 + $0x30] sm:$0xff]
        %v586 = vld [vmem:[%s2 + $0x38] sm:$0xff]
        %v587 = vld [vmem:[%s2 + $0x40] sm:$0xff]
        %v588 = vld [vmem:[%s2 + $0x48] sm:$0xff]
        %v589 = vld [vmem:[%s2 + $0x50] sm:$0xff]
        %v590 = vld [vmem:[%s2 + $0x58] sm:$0xff]
        %v591 = vld [vmem:[%s2 + $0x60] sm:$0xff]
        %v592 = vld [vmem:[%s2 + $0x68] sm:$0xff]
        %v593 = vld [vmem:[%s2 + $0x70] sm:$0xff]
        %v594 = vld [vmem:[%s2 + $0x78] sm:$0xff]
        %v595 = vld [vmem:[%s2 + $0x80] sm:$0xff]
        %v596 = vld [vmem:[%s2 + $0x88] sm:$0xff]
        %v597 = vld [vmem:[%s2 + $0x90] sm:$0xff]
        %v598 = vld [vmem:[%s2 + $0x98] sm:$0xff]
        %v599 = vld [vmem:[%s2 + $0xa0] sm:$0xff]
        %v600 = vld [vmem:[%s2 + $0xa8] sm:$0xff]
        %v601 = vld [vmem:[%s2 + $0xb0] sm:$0xff]
        %v602 = vld [vmem:[%s2 + $0xb8] sm:$0xff]
        %v603 = vld [vmem:[%s2 + $0xc0] sm:$0xff]
        %v604 = vld [vmem:[%s2 + $0xc8] sm:$0xff]
        %v605 = vld [vmem:[%s2 + $0xd0] sm:$0xff]
        %v606 = vld [vmem:[%s2 + $0xd8] sm:$0xff]
        %v607 = vld [vmem:[%s2 + $0xe0] sm:$0xff]
        %v608 = vld [vmem:[%s2 + $0xe8] sm:$0xff]
        %v609 = vld [vmem:[%s2 + $0xf0] sm:$0xff]
        %v610 = vld [vmem:[%s2 + $0xf8] sm:$0xff]
        %v611 = vlaneseq
        %v612 = vshrl.u32 %v611, 7
        %v613 = vsub.s32 1, %v612
        %v614 = vrot.slane %v336, %v613
        %v615 = vlaneseq
        %v616 = vshrl.u32 %v615, 7
        %v617 = vsub.s32 5, %v616
        %v618 = vrot.slane %v336, %v617
        %v621 = vlaneseq
        %v622 = vshrl.u32 %v621, 7
        %v623 = vsub.s32 1, %v622
        %v624 = vrot.slane %v614, %v623
        %v625 = vlaneseq
        %v626 = vshrl.u32 %v625, 7
        %v627 = vsub.s32 1, %v626
        %v628 = vrot.slane %v618, %v627
        %v661 = vunpack.c.l.b16 %v579
        %v662 = vunpack.c.h.b16 %v579
        %v663 = vunpack.c.l.b16 %v580
        %v664 = vunpack.c.h.b16 %v580
        %v665 = vunpack.c.l.b16 %v581
        %v666 = vunpack.c.h.b16 %v581
        %v667 = vunpack.c.l.b16 %v582
        %v668 = vunpack.c.h.b16 %v582
        %v669 = vunpack.c.l.b16 %v583
        %v670 = vunpack.c.h.b16 %v583
        %v671 = vunpack.c.l.b16 %v584
        %v672 = vunpack.c.h.b16 %v584
        %v673 = vunpack.c.l.b16 %v585
        %v674 = vunpack.c.h.b16 %v585
        %v675 = vunpack.c.l.b16 %v586
        %v676 = vunpack.c.h.b16 %v586
        %v677 = vunpack.c.l.b16 %v587
        %v678 = vunpack.c.h.b16 %v587
        %v679 = vunpack.c.l.b16 %v588
        %v680 = vunpack.c.h.b16 %v588
        %v681 = vunpack.c.l.b16 %v589
        %v682 = vunpack.c.h.b16 %v589
        %v683 = vunpack.c.l.b16 %v590
        %v684 = vunpack.c.h.b16 %v590
        %v685 = vunpack.c.l.b16 %v591
        %v686 = vunpack.c.h.b16 %v591
        %v687 = vunpack.c.l.b16 %v592
        %v688 = vunpack.c.h.b16 %v592
        %v689 = vunpack.c.l.b16 %v593
        %v690 = vunpack.c.h.b16 %v593
        %v691 = vunpack.c.l.b16 %v594
        %v692 = vunpack.c.h.b16 %v594
        %v693 = vunpack.c.l.b16 %v595
        %v694 = vunpack.c.h.b16 %v595
        %v695 = vunpack.c.l.b16 %v596
        %v696 = vunpack.c.h.b16 %v596
        %v697 = vunpack.c.l.b16 %v597
        %v698 = vunpack.c.h.b16 %v597
        %v699 = vunpack.c.l.b16 %v598
        %v700 = vunpack.c.h.b16 %v598
        %v701 = vunpack.c.l.b16 %v599
        %v702 = vunpack.c.h.b16 %v599
        %v703 = vunpack.c.l.b16 %v600
        %v704 = vunpack.c.h.b16 %v600
        %v705 = vunpack.c.l.b16 %v601
        %v706 = vunpack.c.h.b16 %v601
        %v707 = vunpack.c.l.b16 %v602
        %v708 = vunpack.c.h.b16 %v602
        %v709 = vunpack.c.l.b16 %v603
        %v710 = vunpack.c.h.b16 %v603
        %v711 = vunpack.c.l.b16 %v604
        %v712 = vunpack.c.h.b16 %v604
        %v713 = vunpack.c.l.b16 %v605
        %v714 = vunpack.c.h.b16 %v605
        %v715 = vunpack.c.l.b16 %v606
        %v716 = vunpack.c.h.b16 %v606
        %v717 = vunpack.c.l.b16 %v607
        %v718 = vunpack.c.h.b16 %v607
        %v719 = vunpack.c.l.b16 %v608
        %v720 = vunpack.c.h.b16 %v608
        %v721 = vunpack.c.l.b16 %v609
        %v722 = vunpack.c.h.b16 %v609
        %v723 = vunpack.c.l.b16 %v610
        %v724 = vunpack.c.h.b16 %v610
        %v725 = vpack.c.b16 %v663, %v661
        %v726 = vpack.c.b16 %v664, %v662
        %v727 = vpack.c.b16 %v667, %v665
        %v728 = vpack.c.b16 %v668, %v666
        %v729 = vpack.c.b16 %v671, %v669
        %v730 = vpack.c.b16 %v672, %v670
        %v731 = vpack.c.b16 %v675, %v673
        %v732 = vpack.c.b16 %v676, %v674
        %v733 = vpack.c.b16 %v679, %v677
        %v734 = vpack.c.b16 %v680, %v678
        %v735 = vpack.c.b16 %v683, %v681
        %v736 = vpack.c.b16 %v684, %v682
        %v737 = vpack.c.b16 %v687, %v685
        %v738 = vpack.c.b16 %v688, %v686
        %v739 = vpack.c.b16 %v691, %v689
        %v740 = vpack.c.b16 %v692, %v690
        %v741 = vpack.c.b16 %v695, %v693
        %v742 = vpack.c.b16 %v696, %v694
        %v743 = vpack.c.b16 %v699, %v697
        %v744 = vpack.c.b16 %v700, %v698
        %v745 = vpack.c.b16 %v703, %v701
        %v746 = vpack.c.b16 %v704, %v702
        %v747 = vpack.c.b16 %v707, %v705
        %v748 = vpack.c.b16 %v708, %v706
        %v749 = vpack.c.b16 %v711, %v709
        %v750 = vpack.c.b16 %v712, %v710
        %v751 = vpack.c.b16 %v715, %v713
        %v752 = vpack.c.b16 %v716, %v714
        %v753 = vpack.c.b16 %v719, %v717
        %v754 = vpack.c.b16 %v720, %v718
        %v755 = vpack.c.b16 %v723, %v721
        %v756 = vpack.c.b16 %v724, %v722
        %789 = vmatprep.subr.bf16.mxu0 %v726
        %790 = vmatpush1.bf16.msra.mxu0 %v725
        %791 = vmatprep.subr.bf16.mxu0 %v728
        %792 = vmatpush1.bf16.msra.mxu0 %v727
        %793 = vmatprep.subr.bf16.mxu0 %v730
        %794 = vmatpush1.bf16.msra.mxu0 %v729
        %795 = vmatprep.subr.bf16.mxu0 %v732
        %796 = vmatpush1.bf16.msra.mxu0 %v731
        %797 = vmatprep.subr.bf16.mxu0 %v734
        %798 = vmatpush1.bf16.msra.mxu0 %v733
        %799 = vmatprep.subr.bf16.mxu0 %v736
        %800 = vmatpush1.bf16.msra.mxu0 %v735
        %801 = vmatprep.subr.bf16.mxu0 %v738
        %802 = vmatpush1.bf16.msra.mxu0 %v737
        %803 = vmatprep.subr.bf16.mxu0 %v740
        %804 = vmatpush1.bf16.msra.mxu0 %v739
        %805 = vmatprep.subr.bf16.mxu0 %v742
        %806 = vmatpush1.bf16.msra.mxu0 %v741
        %807 = vmatprep.subr.bf16.mxu0 %v744
        %808 = vmatpush1.bf16.msra.mxu0 %v743
        %809 = vmatprep.subr.bf16.mxu0 %v746
        %810 = vmatpush1.bf16.msra.mxu0 %v745
        %811 = vmatprep.subr.bf16.mxu0 %v748
        %812 = vmatpush1.bf16.msra.mxu0 %v747
        %813 = vmatprep.subr.bf16.mxu0 %v750
        %814 = vmatpush1.bf16.msra.mxu0 %v749
        %815 = vmatprep.subr.bf16.mxu0 %v752
        %816 = vmatpush1.bf16.msra.mxu0 %v751
        %817 = vmatprep.subr.bf16.mxu0 %v754
        %818 = vmatpush1.bf16.msra.mxu0 %v753
        %819 = vmatprep.subr.bf16.mxu0 %v756
        %820 = vmatpush1.bf16.msra.mxu0 %v755
        %821 = vmatprep.mubr.bf16.mxu0 %v564
        %822 = vmatmul.mubr.bf16.gmra.mrb[0].mxu0 %v563
        %v823 = vpop.f32.mrb[0].mxu0
        %v824 = vadd.f32 %v624, %v823
        %v825 = vpop.f32.mrb[0].mxu0
        %v826 = vadd.f32 %v628, %v825
        %v827 = vpop.f32.mrb[0].mxu0
        %v828 = vadd.f32 %v624, %v827
        %v829 = vpop.f32.mrb[0].mxu0
        %v830 = vadd.f32 %v628, %v829
        %831 = vmatprep.mubr.bf16.mxu0 %v566
        %832 = vmatmul.mubr.bf16.gmra.mrb[0].mxu0 %v565
        %v833 = vpop.f32.mrb[0].mxu0
        %v834 = vadd.f32 %v624, %v833
        %v835 = vpop.f32.mrb[0].mxu0
        %v836 = vadd.f32 %v628, %v835
        %v837 = vpop.f32.mrb[0].mxu0
        %v838 = vadd.f32 %v624, %v837
        %v839 = vpop.f32.mrb[0].mxu0
        %v840 = vadd.f32 %v628, %v839
        %841 = vmatprep.mubr.bf16.mxu0 %v568
        %842 = vmatmul.mubr.bf16.gmra.mrb[0].mxu0 %v567
        %v843 = vpop.f32.mrb[0].mxu0
        %v844 = vadd.f32 %v624, %v843
        %v845 = vpop.f32.mrb[0].mxu0
        %v846 = vadd.f32 %v628, %v845
        %v847 = vpop.f32.mrb[0].mxu0
        %v848 = vadd.f32 %v624, %v847
        %v849 = vpop.f32.mrb[0].mxu0
        %v850 = vadd.f32 %v628, %v849
        %851 = vmatprep.mubr.bf16.mxu0 %v570
        %852 = vmatmul.mubr.bf16.gmra.mrb[0].mxu0 %v569
        %v853 = vpop.f32.mrb[0].mxu0
        %v854 = vadd.f32 %v624, %v853
        %v855 = vpop.f32.mrb[0].mxu0
        %v856 = vadd.f32 %v628, %v855
        %v857 = vpop.f32.mrb[0].mxu0
        %v858 = vadd.f32 %v624, %v857
        %v859 = vpop.f32.mrb[0].mxu0
        %v860 = vadd.f32 %v628, %v859
        %861 = vmatprep.mubr.bf16.mxu0 %v572
        %862 = vmatmul.mubr.bf16.gmra.mrb[0].mxu0 %v571
        %v863 = vpop.f32.mrb[0].mxu0
        %v864 = vadd.f32 %v624, %v863
        %v865 = vpop.f32.mrb[0].mxu0
        %v866 = vadd.f32 %v628, %v865
        %v867 = vpop.f32.mrb[0].mxu0
        %v868 = vadd.f32 %v624, %v867
        %v869 = vpop.f32.mrb[0].mxu0
        %v870 = vadd.f32 %v628, %v869
        %871 = vmatprep.mubr.bf16.mxu0 %v574
        %872 = vmatmul.mubr.bf16.gmra.mrb[0].mxu0 %v573
        %v873 = vpop.f32.mrb[0].mxu0
        %v874 = vadd.f32 %v624, %v873
        %v875 = vpop.f32.mrb[0].mxu0
        %v876 = vadd.f32 %v628, %v875
        %v877 = vpop.f32.mrb[0].mxu0
        %v878 = vadd.f32 %v624, %v877
        %v879 = vpop.f32.mrb[0].mxu0
        %v880 = vadd.f32 %v628, %v879
        %881 = vmatprep.mubr.bf16.mxu0 %v576
        %882 = vmatmul.mubr.bf16.gmra.mrb[0].mxu0 %v575
        %v883 = vpop.f32.mrb[0].mxu0
        %v884 = vadd.f32 %v624, %v883
        %v885 = vpop.f32.mrb[0].mxu0
        %v886 = vadd.f32 %v628, %v885
        %v887 = vpop.f32.mrb[0].mxu0
        %v888 = vadd.f32 %v624, %v887
        %v889 = vpop.f32.mrb[0].mxu0
        %v890 = vadd.f32 %v628, %v889
        %891 = vmatprep.mubr.bf16.mxu0 %v578
        %892 = vmatmul.mubr.bf16.gmra.mrb[0].mxu0 %v577
        %v893 = vpop.f32.mrb[0].mxu0
        %v894 = vadd.f32 %v624, %v893
        %v895 = vpop.f32.mrb[0].mxu0
        %v896 = vadd.f32 %v628, %v895
        %v897 = vpop.f32.mrb[0].mxu0
        %v898 = vadd.f32 %v624, %v897
        %v899 = vpop.f32.mrb[0].mxu0
        %v900 = vadd.f32 %v628, %v899
        %901 = vdwg.mxu0
        %v902 = vmax.f32 %v824, 0.0
        %v903 = vmax.f32 %v826, 0.0
        %v904 = vmax.f32 %v828, 0.0
        %v905 = vmax.f32 %v830, 0.0
        %v906 = vmax.f32 %v834, 0.0
        %v907 = vmax.f32 %v836, 0.0
        %v908 = vmax.f32 %v838, 0.0
        %v909 = vmax.f32 %v840, 0.0
        %v910 = vmax.f32 %v844, 0.0
        %v911 = vmax.f32 %v846, 0.0
        %v912 = vmax.f32 %v848, 0.0
        %v913 = vmax.f32 %v850, 0.0
        %v914 = vmax.f32 %v854, 0.0
        %v915 = vmax.f32 %v856, 0.0
        %v916 = vmax.f32 %v858, 0.0
        %v917 = vmax.f32 %v860, 0.0
        %v918 = vmax.f32 %v864, 0.0
        %v919 = vmax.f32 %v866, 0.0
        %v920 = vmax.f32 %v868, 0.0
        %v921 = vmax.f32 %v870, 0.0
        %v922 = vmax.f32 %v874, 0.0
        %v923 = vmax.f32 %v876, 0.0
        %v924 = vmax.f32 %v878, 0.0
        %v925 = vmax.f32 %v880, 0.0
        %v926 = vmax.f32 %v884, 0.0
        %v927 = vmax.f32 %v886, 0.0
        %v928 = vmax.f32 %v888, 0.0
        %v929 = vmax.f32 %v890, 0.0
        %v930 = vmax.f32 %v894, 0.0
        %v931 = vmax.f32 %v896, 0.0
        %v932 = vmax.f32 %v898, 0.0
        %v933 = vmax.f32 %v900, 0.0
        %v934 = vpack.c.bf16 %v904, %v902
        %v935 = vpack.c.bf16 %v905, %v903
        %v936 = vpack.c.bf16 %v908, %v906
        %v937 = vpack.c.bf16 %v909, %v907
        %v938 = vpack.c.bf16 %v912, %v910
        %v939 = vpack.c.bf16 %v913, %v911
        %v940 = vpack.c.bf16 %v916, %v914
        %v941 = vpack.c.bf16 %v917, %v915
        %v942 = vpack.c.bf16 %v920, %v918
        %v943 = vpack.c.bf16 %v921, %v919
        %v944 = vpack.c.bf16 %v924, %v922
        %v945 = vpack.c.bf16 %v925, %v923
        %v946 = vpack.c.bf16 %v928, %v926
        %v947 = vpack.c.bf16 %v929, %v927
        %v948 = vpack.c.bf16 %v932, %v930
        %v949 = vpack.c.bf16 %v933, %v931
        %v950 = vld [vmem:[#allocation3] sm:$0xff]
        %v951 = vld [vmem:[#allocation3 + $0x8] sm:$0xff]
        %v952 = vld [vmem:[#allocation3 + $0x10] sm:$0xff]
        %v953 = vld [vmem:[#allocation3 + $0x18] sm:$0xff]
        %v954 = vld [vmem:[#allocation3 + $0x20] sm:$0xff]
        %v955 = vld [vmem:[#allocation3 + $0x28] sm:$0xff]
        %v956 = vld [vmem:[#allocation3 + $0x30] sm:$0xff]
        %v957 = vld [vmem:[#allocation3 + $0x38] sm:$0xff]
        %v958 = vld [vmem:[#allocation3 + $0x40] sm:$0xff]
        %v959 = vld [vmem:[#allocation3 + $0x48] sm:$0xff]
        %v960 = vld [vmem:[#allocation3 + $0x50] sm:$0xff]
        %v961 = vld [vmem:[#allocation3 + $0x58] sm:$0xff]
        %v962 = vld [vmem:[#allocation3 + $0x60] sm:$0xff]
        %v963 = vld [vmem:[#allocation3 + $0x68] sm:$0xff]
        %v964 = vld [vmem:[#allocation3 + $0x70] sm:$0xff]
        %v965 = vld [vmem:[#allocation3 + $0x78] sm:$0xff]
        %v966 = vld [vmem:[#allocation3 + $0x80] sm:$0xff]
        %v967 = vld [vmem:[#allocation3 + $0x88] sm:$0xff]
        %v968 = vld [vmem:[#allocation3 + $0x90] sm:$0xff]
        %v969 = vld [vmem:[#allocation3 + $0x98] sm:$0xff]
        %v970 = vld [vmem:[#allocation3 + $0xa0] sm:$0xff]
        %v971 = vld [vmem:[#allocation3 + $0xa8] sm:$0xff]
        %v972 = vld [vmem:[#allocation3 + $0xb0] sm:$0xff]
        %v973 = vld [vmem:[#allocation3 + $0xb8] sm:$0xff]
        %v974 = vld [vmem:[#allocation3 + $0xc0] sm:$0xff]
        %v975 = vld [vmem:[#allocation3 + $0xc8] sm:$0xff]
        %v976 = vld [vmem:[#allocation3 + $0xd0] sm:$0xff]
        %v977 = vld [vmem:[#allocation3 + $0xd8] sm:$0xff]
        %v978 = vld [vmem:[#allocation3 + $0xe0] sm:$0xff]
        %v979 = vld [vmem:[#allocation3 + $0xe8] sm:$0xff]
        %v980 = vld [vmem:[#allocation3 + $0xf0] sm:$0xff]
        %v981 = vld [vmem:[#allocation3 + $0xf8] sm:$0xff]
        %v982 = vlaneseq
        %v983 = vshrl.u32 %v982, 7
        %v984 = vsub.s32 2, %v983
        %v985 = vrot.slane %v336, %v984
        %v986 = vlaneseq
        %v987 = vshrl.u32 %v986, 7
        %v988 = vsub.s32 6, %v987
        %v989 = vrot.slane %v336, %v988
        %v992 = vlaneseq
        %v993 = vshrl.u32 %v992, 7
        %v994 = vsub.s32 2, %v993
        %v995 = vrot.slane %v985, %v994
        %v996 = vlaneseq
        %v997 = vshrl.u32 %v996, 7
        %v998 = vsub.s32 2, %v997
        %v999 = vrot.slane %v989, %v998
        %v1032 = vunpack.c.l.b16 %v950
        %v1033 = vunpack.c.h.b16 %v950
        %v1034 = vunpack.c.l.b16 %v951
        %v1035 = vunpack.c.h.b16 %v951
        %v1036 = vunpack.c.l.b16 %v952
        %v1037 = vunpack.c.h.b16 %v952
        %v1038 = vunpack.c.l.b16 %v953
        %v1039 = vunpack.c.h.b16 %v953
        %v1040 = vunpack.c.l.b16 %v954
        %v1041 = vunpack.c.h.b16 %v954
        %v1042 = vunpack.c.l.b16 %v955
        %v1043 = vunpack.c.h.b16 %v955
        %v1044 = vunpack.c.l.b16 %v956
        %v1045 = vunpack.c.h.b16 %v956
        %v1046 = vunpack.c.l.b16 %v957
        %v1047 = vunpack.c.h.b16 %v957
        %v1048 = vunpack.c.l.b16 %v958
        %v1049 = vunpack.c.h.b16 %v958
        %v1050 = vunpack.c.l.b16 %v959
        %v1051 = vunpack.c.h.b16 %v959
        %v1052 = vunpack.c.l.b16 %v960
        %v1053 = vunpack.c.h.b16 %v960
        %v1054 = vunpack.c.l.b16 %v961
        %v1055 = vunpack.c.h.b16 %v961
        %v1056 = vunpack.c.l.b16 %v962
        %v1057 = vunpack.c.h.b16 %v962
        %v1058 = vunpack.c.l.b16 %v963
        %v1059 = vunpack.c.h.b16 %v963
        %v1060 = vunpack.c.l.b16 %v964
        %v1061 = vunpack.c.h.b16 %v964
        %v1062 = vunpack.c.l.b16 %v965
        %v1063 = vunpack.c.h.b16 %v965
        %v1064 = vunpack.c.l.b16 %v966
        %v1065 = vunpack.c.h.b16 %v966
        %v1066 = vunpack.c.l.b16 %v967
        %v1067 = vunpack.c.h.b16 %v967
        %v1068 = vunpack.c.l.b16 %v968
        %v1069 = vunpack.c.h.b16 %v968
        %v1070 = vunpack.c.l.b16 %v969
        %v1071 = vunpack.c.h.b16 %v969
        %v1072 = vunpack.c.l.b16 %v970
        %v1073 = vunpack.c.h.b16 %v970
        %v1074 = vunpack.c.l.b16 %v971
        %v1075 = vunpack.c.h.b16 %v971
        %v1076 = vunpack.c.l.b16 %v972
        %v1077 = vunpack.c.h.b16 %v972
        %v1078 = vunpack.c.l.b16 %v973
        %v1079 = vunpack.c.h.b16 %v973
        %v1080 = vunpack.c.l.b16 %v974
        %v1081 = vunpack.c.h.b16 %v974
        %v1082 = vunpack.c.l.b16 %v975
        %v1083 = vunpack.c.h.b16 %v975
        %v1084 = vunpack.c.l.b16 %v976
        %v1085 = vunpack.c.h.b16 %v976
        %v1086 = vunpack.c.l.b16 %v977
        %v1087 = vunpack.c.h.b16 %v977
        %v1088 = vunpack.c.l.b16 %v978
        %v1089 = vunpack.c.h.b16 %v978
        %v1090 = vunpack.c.l.b16 %v979
        %v1091 = vunpack.c.h.b16 %v979
        %v1092 = vunpack.c.l.b16 %v980
        %v1093 = vunpack.c.h.b16 %v980
        %v1094 = vunpack.c.l.b16 %v981
        %v1095 = vunpack.c.h.b16 %v981
        %v1096 = vpack.c.b16 %v1034, %v1032
        %v1097 = vpack.c.b16 %v1035, %v1033
        %v1098 = vpack.c.b16 %v1038, %v1036
        %v1099 = vpack.c.b16 %v1039, %v1037
        %v1100 = vpack.c.b16 %v1042, %v1040
        %v1101 = vpack.c.b16 %v1043, %v1041
        %v1102 = vpack.c.b16 %v1046, %v1044
        %v1103 = vpack.c.b16 %v1047, %v1045
        %v1104 = vpack.c.b16 %v1050, %v1048
        %v1105 = vpack.c.b16 %v1051, %v1049
        %v1106 = vpack.c.b16 %v1054, %v1052
        %v1107 = vpack.c.b16 %v1055, %v1053
        %v1108 = vpack.c.b16 %v1058, %v1056
        %v1109 = vpack.c.b16 %v1059, %v1057
        %v1110 = vpack.c.b16 %v1062, %v1060
        %v1111 = vpack.c.b16 %v1063, %v1061
        %v1112 = vpack.c.b16 %v1066, %v1064
        %v1113 = vpack.c.b16 %v1067, %v1065
        %v1114 = vpack.c.b16 %v1070, %v1068
        %v1115 = vpack.c.b16 %v1071, %v1069
        %v1116 = vpack.c.b16 %v1074, %v1072
        %v1117 = vpack.c.b16 %v1075, %v1073
        %v1118 = vpack.c.b16 %v1078, %v1076
        %v1119 = vpack.c.b16 %v1079, %v1077
        %v1120 = vpack.c.b16 %v1082, %v1080
        %v1121 = vpack.c.b16 %v1083, %v1081
        %v1122 = vpack.c.b16 %v1086, %v1084
        %v1123 = vpack.c.b16 %v1087, %v1085
        %v1124 = vpack.c.b16 %v1090, %v1088
        %v1125 = vpack.c.b16 %v1091, %v1089
        %v1126 = vpack.c.b16 %v1094, %v1092
        %v1127 = vpack.c.b16 %v1095, %v1093
        %1160 = vmatprep.subr.bf16.mxu0 %v1097
        %1161 = vmatpush1.bf16.msra.mxu0 %v1096
        %1162 = vmatprep.subr.bf16.mxu0 %v1099
        %1163 = vmatpush1.bf16.msra.mxu0 %v1098
        %1164 = vmatprep.subr.bf16.mxu0 %v1101
        %1165 = vmatpush1.bf16.msra.mxu0 %v1100
        %1166 = vmatprep.subr.bf16.mxu0 %v1103
        %1167 = vmatpush1.bf16.msra.mxu0 %v1102
        %1168 = vmatprep.subr.bf16.mxu0 %v1105
        %1169 = vmatpush1.bf16.msra.mxu0 %v1104
        %1170 = vmatprep.subr.bf16.mxu0 %v1107
        %1171 = vmatpush1.bf16.msra.mxu0 %v1106
        %1172 = vmatprep.subr.bf16.mxu0 %v1109
        %1173 = vmatpush1.bf16.msra.mxu0 %v1108
        %1174 = vmatprep.subr.bf16.mxu0 %v1111
        %1175 = vmatpush1.bf16.msra.mxu0 %v1110
        %1176 = vmatprep.subr.bf16.mxu0 %v1113
        %1177 = vmatpush1.bf16.msra.mxu0 %v1112
        %1178 = vmatprep.subr.bf16.mxu0 %v1115
        %1179 = vmatpush1.bf16.msra.mxu0 %v1114
        %1180 = vmatprep.subr.bf16.mxu0 %v1117
        %1181 = vmatpush1.bf16.msra.mxu0 %v1116
        %1182 = vmatprep.subr.bf16.mxu0 %v1119
        %1183 = vmatpush1.bf16.msra.mxu0 %v1118
        %1184 = vmatprep.subr.bf16.mxu0 %v1121
        %1185 = vmatpush1.bf16.msra.mxu0 %v1120
        %1186 = vmatprep.subr.bf16.mxu0 %v1123
        %1187 = vmatpush1.bf16.msra.mxu0 %v1122
        %1188 = vmatprep.subr.bf16.mxu0 %v1125
        %1189 = vmatpush1.bf16.msra.mxu0 %v1124
        %1190 = vmatprep.subr.bf16.mxu0 %v1127
        %1191 = vmatpush1.bf16.msra.mxu0 %v1126
        %1192 = vmatprep.mubr.bf16.mxu0 %v935
        %1193 = vmatmul.mubr.bf16.gmra.mrb[0].mxu0 %v934
        %v1194 = vpop.f32.mrb[0].mxu0
        %v1195 = vadd.f32 %v995, %v1194
        %v1196 = vpop.f32.mrb[0].mxu0
        %v1197 = vadd.f32 %v999, %v1196
        %v1198 = vpop.f32.mrb[0].mxu0
        %v1199 = vadd.f32 %v995, %v1198
        %v1200 = vpop.f32.mrb[0].mxu0
        %v1201 = vadd.f32 %v999, %v1200
        %1202 = vmatprep.mubr.bf16.mxu0 %v937
        %1203 = vmatmul.mubr.bf16.gmra.mrb[0].mxu0 %v936
        %v1204 = vpop.f32.mrb[0].mxu0
        %v1205 = vadd.f32 %v995, %v1204
        %v1206 = vpop.f32.mrb[0].mxu0
        %v1207 = vadd.f32 %v999, %v1206
        %v1208 = vpop.f32.mrb[0].mxu0
        %v1209 = vadd.f32 %v995, %v1208
        %v1210 = vpop.f32.mrb[0].mxu0
        %v1211 = vadd.f32 %v999, %v1210
        %1212 = vmatprep.mubr.bf16.mxu0 %v939
        %1213 = vmatmul.mubr.bf16.gmra.mrb[0].mxu0 %v938
        %v1214 = vpop.f32.mrb[0].mxu0
        %v1215 = vadd.f32 %v995, %v1214
        %v1216 = vpop.f32.mrb[0].mxu0
        %v1217 = vadd.f32 %v999, %v1216
        %v1218 = vpop.f32.mrb[0].mxu0
        %v1219 = vadd.f32 %v995, %v1218
        %v1220 = vpop.f32.mrb[0].mxu0
        %v1221 = vadd.f32 %v999, %v1220
        %1222 = vmatprep.mubr.bf16.mxu0 %v941
        %1223 = vmatmul.mubr.bf16.gmra.mrb[0].mxu0 %v940
        %v1224 = vpop.f32.mrb[0].mxu0
        %v1225 = vadd.f32 %v995, %v1224
        %v1226 = vpop.f32.mrb[0].mxu0
        %v1227 = vadd.f32 %v999, %v1226
        %v1228 = vpop.f32.mrb[0].mxu0
        %v1229 = vadd.f32 %v995, %v1228
        %v1230 = vpop.f32.mrb[0].mxu0
        %v1231 = vadd.f32 %v999, %v1230
        %1232 = vmatprep.mubr.bf16.mxu0 %v943
        %1233 = vmatmul.mubr.bf16.gmra.mrb[0].mxu0 %v942
        %v1234 = vpop.f32.mrb[0].mxu0
        %v1235 = vadd.f32 %v995, %v1234
        %v1236 = vpop.f32.mrb[0].mxu0
        %v1237 = vadd.f32 %v999, %v1236
        %v1238 = vpop.f32.mrb[0].mxu0
        %v1239 = vadd.f32 %v995, %v1238
        %v1240 = vpop.f32.mrb[0].mxu0
        %v1241 = vadd.f32 %v999, %v1240
        %1242 = vmatprep.mubr.bf16.mxu0 %v945
        %1243 = vmatmul.mubr.bf16.gmra.mrb[0].mxu0 %v944
        %v1244 = vpop.f32.mrb[0].mxu0
        %v1245 = vadd.f32 %v995, %v1244
        %v1246 = vpop.f32.mrb[0].mxu0
        %v1247 = vadd.f32 %v999, %v1246
        %v1248 = vpop.f32.mrb[0].mxu0
        %v1249 = vadd.f32 %v995, %v1248
        %v1250 = vpop.f32.mrb[0].mxu0
        %v1251 = vadd.f32 %v999, %v1250
        %1252 = vmatprep.mubr.bf16.mxu0 %v947
        %1253 = vmatmul.mubr.bf16.gmra.mrb[0].mxu0 %v946
        %v1254 = vpop.f32.mrb[0].mxu0
        %v1255 = vadd.f32 %v995, %v1254
        %v1256 = vpop.f32.mrb[0].mxu0
        %v1257 = vadd.f32 %v999, %v1256
        %v1258 = vpop.f32.mrb[0].mxu0
        %v1259 = vadd.f32 %v995, %v1258
        %v1260 = vpop.f32.mrb[0].mxu0
        %v1261 = vadd.f32 %v999, %v1260
        %1262 = vmatprep.mubr.bf16.mxu0 %v949
        %1263 = vmatmul.mubr.bf16.gmra.mrb[0].mxu0 %v948
        %v1264 = vpop.f32.mrb[0].mxu0
        %v1265 = vadd.f32 %v995, %v1264
        %v1266 = vpop.f32.mrb[0].mxu0
        %v1267 = vadd.f32 %v999, %v1266
        %v1268 = vpop.f32.mrb[0].mxu0
        %v1269 = vadd.f32 %v995, %v1268
        %v1270 = vpop.f32.mrb[0].mxu0
        %v1271 = vadd.f32 %v999, %v1270
        %1272 = vdwg.mxu0
        %v1273 = vmax.f32 %v1195, 0.0
        %v1274 = vmax.f32 %v1197, 0.0
        %v1275 = vmax.f32 %v1199, 0.0
        %v1276 = vmax.f32 %v1201, 0.0
        %v1277 = vmax.f32 %v1205, 0.0
        %v1278 = vmax.f32 %v1207, 0.0
        %v1279 = vmax.f32 %v1209, 0.0
        %v1280 = vmax.f32 %v1211, 0.0
        %v1281 = vmax.f32 %v1215, 0.0
        %v1282 = vmax.f32 %v1217, 0.0
        %v1283 = vmax.f32 %v1219, 0.0
        %v1284 = vmax.f32 %v1221, 0.0
        %v1285 = vmax.f32 %v1225, 0.0
        %v1286 = vmax.f32 %v1227, 0.0
        %v1287 = vmax.f32 %v1229, 0.0
        %v1288 = vmax.f32 %v1231, 0.0
        %v1289 = vmax.f32 %v1235, 0.0
        %v1290 = vmax.f32 %v1237, 0.0
        %v1291 = vmax.f32 %v1239, 0.0
        %v1292 = vmax.f32 %v1241, 0.0
        %v1293 = vmax.f32 %v1245, 0.0
        %v1294 = vmax.f32 %v1247, 0.0
        %v1295 = vmax.f32 %v1249, 0.0
        %v1296 = vmax.f32 %v1251, 0.0
        %v1297 = vmax.f32 %v1255, 0.0
        %v1298 = vmax.f32 %v1257, 0.0
        %v1299 = vmax.f32 %v1259, 0.0
        %v1300 = vmax.f32 %v1261, 0.0
        %v1301 = vmax.f32 %v1265, 0.0
        %v1302 = vmax.f32 %v1267, 0.0
        %v1303 = vmax.f32 %v1269, 0.0
        %v1304 = vmax.f32 %v1271, 0.0
        %v1305 = vpack.c.bf16 %v1275, %v1273
        %v1306 = vpack.c.bf16 %v1276, %v1274
        %v1307 = vpack.c.bf16 %v1279, %v1277
        %v1308 = vpack.c.bf16 %v1280, %v1278
        %v1309 = vpack.c.bf16 %v1283, %v1281
        %v1310 = vpack.c.bf16 %v1284, %v1282
        %v1311 = vpack.c.bf16 %v1287, %v1285
        %v1312 = vpack.c.bf16 %v1288, %v1286
        %v1313 = vpack.c.bf16 %v1291, %v1289
        %v1314 = vpack.c.bf16 %v1292, %v1290
        %v1315 = vpack.c.bf16 %v1295, %v1293
        %v1316 = vpack.c.bf16 %v1296, %v1294
        %v1317 = vpack.c.bf16 %v1299, %v1297
        %v1318 = vpack.c.bf16 %v1300, %v1298
        %v1319 = vpack.c.bf16 %v1303, %v1301
        %v1320 = vpack.c.bf16 %v1304, %v1302
        %v1321 = vld [vmem:[#allocation6] sm:$0xf]
        %v1322 = vld [vmem:[#allocation6 + $0x4] sm:$0xf]
        %v1323 = vld [vmem:[#allocation6 + $0x8] sm:$0xf]
        %v1324 = vld [vmem:[#allocation6 + $0xc] sm:$0xf]
        %v1325 = vld [vmem:[#allocation6 + $0x10] sm:$0xf]
        %v1326 = vld [vmem:[#allocation6 + $0x14] sm:$0xf]
        %v1327 = vld [vmem:[#allocation6 + $0x18] sm:$0xf]
        %v1328 = vld [vmem:[#allocation6 + $0x1c] sm:$0xf]
        %v1329 = vld [vmem:[#allocation6 + $0x20] sm:$0xf]
        %v1330 = vld [vmem:[#allocation6 + $0x24] sm:$0xf]
        %v1331 = vld [vmem:[#allocation6 + $0x28] sm:$0xf]
        %v1332 = vld [vmem:[#allocation6 + $0x2c] sm:$0xf]
        %v1333 = vld [vmem:[#allocation6 + $0x30] sm:$0xf]
        %v1334 = vld [vmem:[#allocation6 + $0x34] sm:$0xf]
        %v1335 = vld [vmem:[#allocation6 + $0x38] sm:$0xf]
        %v1336 = vld [vmem:[#allocation6 + $0x3c] sm:$0xf]
        %v1337 = vld [vmem:[#allocation6 + $0x40] sm:$0xf]
        %v1338 = vld [vmem:[#allocation6 + $0x44] sm:$0xf]
        %v1339 = vld [vmem:[#allocation6 + $0x48] sm:$0xf]
        %v1340 = vld [vmem:[#allocation6 + $0x4c] sm:$0xf]
        %v1341 = vld [vmem:[#allocation6 + $0x50] sm:$0xf]
        %v1342 = vld [vmem:[#allocation6 + $0x54] sm:$0xf]
        %v1343 = vld [vmem:[#allocation6 + $0x58] sm:$0xf]
        %v1344 = vld [vmem:[#allocation6 + $0x5c] sm:$0xf]
        %v1345 = vld [vmem:[#allocation6 + $0x60] sm:$0xf]
        %v1346 = vld [vmem:[#allocation6 + $0x64] sm:$0xf]
        %v1347 = vld [vmem:[#allocation6 + $0x68] sm:$0xf]
        %v1348 = vld [vmem:[#allocation6 + $0x6c] sm:$0xf]
        %v1349 = vld [vmem:[#allocation6 + $0x70] sm:$0xf]
        %v1350 = vld [vmem:[#allocation6 + $0x74] sm:$0xf]
        %v1351 = vld [vmem:[#allocation6 + $0x78] sm:$0xf]
        %v1352 = vld [vmem:[#allocation6 + $0x7c] sm:$0xf]
        %s1353 = sld [smem:[#allocation2]]
        %v1354 = vstv %s1353
        %v1387 = vunpack.c.l.b16 %v1321
        %v1388 = vunpack.c.l.b16 %v1322
        %v1389 = vunpack.c.l.b16 %v1323
        %v1390 = vunpack.c.l.b16 %v1324
        %v1391 = vunpack.c.l.b16 %v1325
        %v1392 = vunpack.c.l.b16 %v1326
        %v1393 = vunpack.c.l.b16 %v1327
        %v1394 = vunpack.c.l.b16 %v1328
        %v1395 = vunpack.c.l.b16 %v1329
        %v1396 = vunpack.c.l.b16 %v1330
        %v1397 = vunpack.c.l.b16 %v1331
        %v1398 = vunpack.c.l.b16 %v1332
        %v1399 = vunpack.c.l.b16 %v1333
        %v1400 = vunpack.c.l.b16 %v1334
        %v1401 = vunpack.c.l.b16 %v1335
        %v1402 = vunpack.c.l.b16 %v1336
        %v1403 = vunpack.c.l.b16 %v1337
        %v1404 = vunpack.c.l.b16 %v1338
        %v1405 = vunpack.c.l.b16 %v1339
        %v1406 = vunpack.c.l.b16 %v1340
        %v1407 = vunpack.c.l.b16 %v1341
        %v1408 = vunpack.c.l.b16 %v1342
        %v1409 = vunpack.c.l.b16 %v1343
        %v1410 = vunpack.c.l.b16 %v1344
        %v1411 = vunpack.c.l.b16 %v1345
        %v1412 = vunpack.c.l.b16 %v1346
        %v1413 = vunpack.c.l.b16 %v1347
        %v1414 = vunpack.c.l.b16 %v1348
        %v1415 = vunpack.c.l.b16 %v1349
        %v1416 = vunpack.c.l.b16 %v1350
        %v1417 = vunpack.c.l.b16 %v1351
        %v1418 = vunpack.c.l.b16 %v1352
        %v1419 = vpack.c.b16 %v1388, %v1387
        %v1420 = vpack.c.b16 %v1390, %v1389
        %v1421 = vpack.c.b16 %v1392, %v1391
        %v1422 = vpack.c.b16 %v1394, %v1393
        %v1423 = vpack.c.b16 %v1396, %v1395
        %v1424 = vpack.c.b16 %v1398, %v1397
        %v1425 = vpack.c.b16 %v1400, %v1399
        %v1426 = vpack.c.b16 %v1402, %v1401
        %v1427 = vpack.c.b16 %v1404, %v1403
        %v1428 = vpack.c.b16 %v1406, %v1405
        %v1429 = vpack.c.b16 %v1408, %v1407
        %v1430 = vpack.c.b16 %v1410, %v1409
        %v1431 = vpack.c.b16 %v1412, %v1411
        %v1432 = vpack.c.b16 %v1414, %v1413
        %v1433 = vpack.c.b16 %v1416, %v1415
        %v1434 = vpack.c.b16 %v1418, %v1417
        %1451 = vmatprep.subr.bf16.mxu0 0
        %1452 = vmatpush1.bf16.msra.mxu0 %v1419
        %1453 = vmatprep.subr.bf16.mxu0 0
        %1454 = vmatpush1.bf16.msra.mxu0 %v1420
        %1455 = vmatprep.subr.bf16.mxu0 0
        %1456 = vmatpush1.bf16.msra.mxu0 %v1421
        %1457 = vmatprep.subr.bf16.mxu0 0
        %1458 = vmatpush1.bf16.msra.mxu0 %v1422
        %1459 = vmatprep.subr.bf16.mxu0 0
        %1460 = vmatpush1.bf16.msra.mxu0 %v1423
        %1461 = vmatprep.subr.bf16.mxu0 0
        %1462 = vmatpush1.bf16.msra.mxu0 %v1424
        %1463 = vmatprep.subr.bf16.mxu0 0
        %1464 = vmatpush1.bf16.msra.mxu0 %v1425
        %1465 = vmatprep.subr.bf16.mxu0 0
        %1466 = vmatpush1.bf16.msra.mxu0 %v1426
        %1467 = vmatprep.subr.bf16.mxu0 0
        %1468 = vmatpush1.bf16.msra.mxu0 %v1427
        %1469 = vmatprep.subr.bf16.mxu0 0
        %1470 = vmatpush1.bf16.msra.mxu0 %v1428
        %1471 = vmatprep.subr.bf16.mxu0 0
        %1472 = vmatpush1.bf16.msra.mxu0 %v1429
        %1473 = vmatprep.subr.bf16.mxu0 0
        %1474 = vmatpush1.bf16.msra.mxu0 %v1430
        %1475 = vmatprep.subr.bf16.mxu0 0
        %1476 = vmatpush1.bf16.msra.mxu0 %v1431
        %1477 = vmatprep.subr.bf16.mxu0 0
        %1478 = vmatpush1.bf16.msra.mxu0 %v1432
        %1479 = vmatprep.subr.bf16.mxu0 0
        %1480 = vmatpush1.bf16.msra.mxu0 %v1433
        %1481 = vmatprep.subr.bf16.mxu0 0
        %1482 = vmatpush1.bf16.msra.mxu0 %v1434
        %1483 = vmatprep.mubr.bf16.mxu0 %v1306
        %1484 = vmatmul.mubr.bf16.gmra.mrb[0].mxu0 %v1305
        %v1485 = vpop.f32.mrb[0].mxu0
        %v1486 = vadd.f32 %v1354, %v1485
        %v1487 = vpop.f32.mrb[0].mxu0
        %v1488 = vpop.f32.mrb[0].mxu0
        %v1489 = vadd.f32 %v1354, %v1488
        %v1490 = vpop.f32.mrb[0].mxu0
        %1491 = vmatprep.mubr.bf16.mxu0 %v1308
        %1492 = vmatmul.mubr.bf16.gmra.mrb[0].mxu0 %v1307
        %v1493 = vpop.f32.mrb[0].mxu0
        %v1494 = vadd.f32 %v1354, %v1493
        %v1495 = vpop.f32.mrb[0].mxu0
        %v1496 = vpop.f32.mrb[0].mxu0
        %v1497 = vadd.f32 %v1354, %v1496
        %v1498 = vpop.f32.mrb[0].mxu0
        %1499 = vmatprep.mubr.bf16.mxu0 %v1310
        %1500 = vmatmul.mubr.bf16.gmra.mrb[0].mxu0 %v1309
        %v1501 = vpop.f32.mrb[0].mxu0
        %v1502 = vadd.f32 %v1354, %v1501
        %v1503 = vpop.f32.mrb[0].mxu0
        %v1504 = vpop.f32.mrb[0].mxu0
        %v1505 = vadd.f32 %v1354, %v1504
        %v1506 = vpop.f32.mrb[0].mxu0
        %1507 = vmatprep.mubr.bf16.mxu0 %v1312
        %1508 = vmatmul.mubr.bf16.gmra.mrb[0].mxu0 %v1311
        %v1509 = vpop.f32.mrb[0].mxu0
        %v1510 = vadd.f32 %v1354, %v1509
        %v1511 = vpop.f32.mrb[0].mxu0
        %v1512 = vpop.f32.mrb[0].mxu0
        %v1513 = vadd.f32 %v1354, %v1512
        %v1514 = vpop.f32.mrb[0].mxu0
        %1515 = vmatprep.mubr.bf16.mxu0 %v1314
        %1516 = vmatmul.mubr.bf16.gmra.mrb[0].mxu0 %v1313
        %v1517 = vpop.f32.mrb[0].mxu0
        %v1518 = vadd.f32 %v1354, %v1517
        %v1519 = vpop.f32.mrb[0].mxu0
        %v1520 = vpop.f32.mrb[0].mxu0
        %v1521 = vadd.f32 %v1354, %v1520
        %v1522 = vpop.f32.mrb[0].mxu0
        %1523 = vmatprep.mubr.bf16.mxu0 %v1316
        %1524 = vmatmul.mubr.bf16.gmra.mrb[0].mxu0 %v1315
        %v1525 = vpop.f32.mrb[0].mxu0
        %v1526 = vadd.f32 %v1354, %v1525
        %v1527 = vpop.f32.mrb[0].mxu0
        %v1528 = vpop.f32.mrb[0].mxu0
        %v1529 = vadd.f32 %v1354, %v1528
        %v1530 = vpop.f32.mrb[0].mxu0
        %1531 = vmatprep.mubr.bf16.mxu0 %v1318
        %1532 = vmatmul.mubr.bf16.gmra.mrb[0].mxu0 %v1317
        %v1533 = vpop.f32.mrb[0].mxu0
        %v1534 = vadd.f32 %v1354, %v1533
        %v1535 = vpop.f32.mrb[0].mxu0
        %v1536 = vpop.f32.mrb[0].mxu0
        %v1537 = vadd.f32 %v1354, %v1536
        %v1538 = vpop.f32.mrb[0].mxu0
        %1539 = vmatprep.mubr.bf16.mxu0 %v1320
        %1540 = vmatmul.mubr.bf16.gmra.mrb[0].mxu0 %v1319
        %v1541 = vpop.f32.mrb[0].mxu0
        %v1542 = vadd.f32 %v1354, %v1541
        %v1543 = vpop.f32.mrb[0].mxu0
        %v1544 = vpop.f32.mrb[0].mxu0
        %v1545 = vadd.f32 %v1354, %v1544
        %v1546 = vpop.f32.mrb[0].mxu0
        %1547 = vdwg.mxu0
        %v1548 = vpack.c.bf16 %v1489, %v1486
        %v1549 = vpack.c.bf16 %v1497, %v1494
        %v1550 = vpack.c.bf16 %v1505, %v1502
        %v1551 = vpack.c.bf16 %v1513, %v1510
        %v1552 = vpack.c.bf16 %v1521, %v1518
        %v1553 = vpack.c.bf16 %v1529, %v1526
        %v1554 = vpack.c.bf16 %v1537, %v1534
        %v1555 = vpack.c.bf16 %v1545, %v1542
        %v1564 = vunpack.c.l.b16 %v1548
        %v1565 = vunpack.c.h.b16 %v1548
        %v1566 = vunpack.c.l.b16 %v1549
        %v1567 = vunpack.c.h.b16 %v1549
        %v1568 = vunpack.c.l.b16 %v1550
        %v1569 = vunpack.c.h.b16 %v1550
        %v1570 = vunpack.c.l.b16 %v1551
        %v1571 = vunpack.c.h.b16 %v1551
        %v1572 = vunpack.c.l.b16 %v1552
        %v1573 = vunpack.c.h.b16 %v1552
        %v1574 = vunpack.c.l.b16 %v1553
        %v1575 = vunpack.c.h.b16 %v1553
        %v1576 = vunpack.c.l.b16 %v1554
        %v1577 = vunpack.c.h.b16 %v1554
        %v1578 = vunpack.c.l.b16 %v1555
        %v1579 = vunpack.c.h.b16 %v1555
        %v1580 = vpack.c.b16 %v1564, %v1564
        %v1581 = vpack.c.b16 %v1565, %v1565
        %v1582 = vpack.c.b16 %v1566, %v1566
        %v1583 = vpack.c.b16 %v1567, %v1567
        %v1584 = vpack.c.b16 %v1568, %v1568
        %v1585 = vpack.c.b16 %v1569, %v1569
        %v1586 = vpack.c.b16 %v1570, %v1570
        %v1587 = vpack.c.b16 %v1571, %v1571
        %v1588 = vpack.c.b16 %v1572, %v1572
        %v1589 = vpack.c.b16 %v1573, %v1573
        %v1590 = vpack.c.b16 %v1574, %v1574
        %v1591 = vpack.c.b16 %v1575, %v1575
        %v1592 = vpack.c.b16 %v1576, %v1576
        %v1593 = vpack.c.b16 %v1577, %v1577
        %v1594 = vpack.c.b16 %v1578, %v1578
        %v1595 = vpack.c.b16 %v1579, %v1579
        %1612 = vst [vmem:[%s303] sm:$0xf] %v1580
        %1613 = vst [vmem:[%s303 + $0x4] sm:$0xf] %v1581
        %1614 = vst [vmem:[%s303 + $0x8] sm:$0xf] %v1582
        %1615 = vst [vmem:[%s303 + $0xc] sm:$0xf] %v1583
        %1616 = vst [vmem:[%s303 + $0x10] sm:$0xf] %v1584
        %1617 = vst [vmem:[%s303 + $0x14] sm:$0xf] %v1585
        %1618 = vst [vmem:[%s303 + $0x18] sm:$0xf] %v1586
        %1619 = vst [vmem:[%s303 + $0x1c] sm:$0xf] %v1587
        %1620 = vst [vmem:[%s303 + $0x20] sm:$0xf] %v1588
        %1621 = vst [vmem:[%s303 + $0x24] sm:$0xf] %v1589
        %1622 = vst [vmem:[%s303 + $0x28] sm:$0xf] %v1590
        %1623 = vst [vmem:[%s303 + $0x2c] sm:$0xf] %v1591
        %1624 = vst [vmem:[%s303 + $0x30] sm:$0xf] %v1592
        %1625 = vst [vmem:[%s303 + $0x34] sm:$0xf] %v1593
        %1626 = vst [vmem:[%s303 + $0x38] sm:$0xf] %v1594
        %1627 = vst [vmem:[%s303 + $0x3c] sm:$0xf] %v1595
        %s1628 = sand.u32 %s184, 1
        %s1629 = scalar_lea.sflag [#allocation5], %s1628
        %s1630 = sand.u32 %s184, 1
        %s1631 = smul.addr %s1630, 64
        %s1632 = scalar_lea.vmem [#allocation8], %s1631
        // Predicated region
        $region57: #{tpu_custom_call.1} parent=47 // pred_check
          %p1633 = pneg %p194
        $region58: #{tpu_custom_call.1} parent=47 // pred_check_branch
          %1635 = sbr.rel (%p1633) target = $region60
        $region59: #{tpu_custom_call.1} parent=47 // pred_region
          %s1636 = smul.u32 16, %s24
          %s1638 = ssub.s32 1024, 1024
          %1639 = vsyncadd %s1629, %s1638
          %s1640 = smul.addr %s1636, 64
          %s1641 = scalar_lea.hbm %s7, %s1640
          %s1642 = sshll.u32 %s1632, 4
          %s1643 = int_to_ptr.vmem [resolvable:$true] %s1642
          %1648 = dma.vmem_to_hbm [thread:$0]  %s1643, 1024, %s1641, %s1629, 64, 64, 4
        $region60: #{tpu_custom_call.1} parent=47 // pred_fallthru
          _
      $region48: #{tpu_custom_call.1} parent=5 // pred_fallthru
        _
      %p1649 = scmp.le.s32.totalorder 2, %s19
      // Predicated region
      $region61: #{tpu_custom_call.1} parent=5 // pred_check
        %p1650 = pneg %p1649
      $region62: #{tpu_custom_call.1} parent=5 // pred_check_branch
        %1652 = sbr.rel (%p1650) target = $region64
      $region63: #{tpu_custom_call.1} parent=5 // pred_region
        %s1653 = ssub.s32 %s19, 2
        // Predicated region
        $region65: #{tpu_custom_call.1} parent=63 // pred_check
          %p1654 = pneg %p200
        $region66: #{tpu_custom_call.1} parent=63 // pred_check_branch
          %1656 = sbr.rel (%p1654) target = $region68
        $region67: #{tpu_custom_call.1} parent=63 // pred_region
          %s1657 = sand.u32 %s185, 1
          %s1658 = scalar_lea.sflag [#allocation5], %s1657
          %s1659 = sand.u32 %s185, 1
          %s1660 = smul.addr %s1659, 64
          %s1661 = scalar_lea.vmem [#allocation8], %s1660
          %1662 = dma.done %s1658, 1024
        $region68: #{tpu_custom_call.1} parent=63 // pred_fallthru
          _
      $region64: #{tpu_custom_call.1} parent=5 // pred_fallthru
        _
    $region6: #{tpu_custom_call.1} parent=1 // loop_footer
      %s23 = sadd.s32 1, %s19
    $region7: #{tpu_custom_call.1} parent=1 // loop_footer_branch
      %18 = sbr.rel target = $region3
    $region8: #{tpu_custom_call.1} parent=1 // loop_exit
      _
    %1663 = vsyncpa [#allocation4], 1
    %s1664 = scalar_lea.sflag [#allocation4], 1
    %1665 = vsyncpa %s1664, 1
    %1666 = vsyncpa [#allocation7], 1
    %1667 = vsyncpa [#allocation5], 1
    %s1668 = scalar_lea.sflag [#allocation5], 1
    %1669 = vsyncpa %s1668, 1

</llo_original>
